<compile_context>
chip_gen: v5e
topology: v5e:2x2
jax: 0.10.0
libtpu: 0.0.40
codegen_flags: <defaults>
</compile_context>

<pallas_src>
import functools

import jax
import jax.numpy as jnp
from jax.experimental import pallas as pl
from jax.experimental.pallas import tpu as pltpu

IN_FEATURES = 28 * 28   # 784
K1_PAD = 896            # 7 * 128, zero-padded K for fc1
H1, H2, H3 = 512, 256, 128
OUT_FEATURES = 10
OUT_PAD = 128           # lane-dense, zero-padded output width


def _round_up(x, m):
    return (x + m - 1) // m * m


def _mlp_kernel(x_ref, w1_ref, b1_ref, w2_ref, b2_ref, w3_ref, b3_ref,
                w4_ref, b4_ref, o_ref):
    # fc1 + ReLU : bf16 operands on the MXU, f32 accumulation / epilogue.
    h = jnp.dot(x_ref[...], w1_ref[...],
                preferred_element_type=jnp.float32) + b1_ref[...]
    h = jnp.maximum(h, 0.0)
    # dropout (eval mode) -> identity
    # fc2 + ReLU
    h = jnp.dot(h.astype(jnp.bfloat16), w2_ref[...],
                preferred_element_type=jnp.float32) + b2_ref[...]
    h = jnp.maximum(h, 0.0)
    # dropout (eval mode) -> identity
    # fc3 + ReLU
    h = jnp.dot(h.astype(jnp.bfloat16), w3_ref[...],
                preferred_element_type=jnp.float32) + b3_ref[...]
    h = jnp.maximum(h, 0.0)
    # fc4 (no activation); output columns 10..127 are exactly zero because the
    # padded weight columns / bias entries are zero.
    out = jnp.dot(h.astype(jnp.bfloat16), w4_ref[...],
                  preferred_element_type=jnp.float32) + b4_ref[...]
    o_ref[...] = out.astype(o_ref.dtype)


@functools.partial(jax.jit, static_argnames=("batch_tile",))
def dnn_forward(x, params, *, batch_tile=256):
    """x: (B, 1, 28, 28) float32 (NCHW, like PyTorch). Returns (B, 10) float32.

    batch_tile: rows of the batch processed per grid step. 256 fills the MXU on
    v6e/v7x (multiple of 256) and v5e (multiple of 128). For very large B on
    v7x, choose batch_tile <= B/2 so the grid has >= 2 parallel steps (2 TCs).
    """
    B = x.shape[0]
    x2d = x.reshape(B, IN_FEATURES).astype(jnp.bfloat16)
    # Pad feature dim 784 -> 896 (zeros contribute nothing to the dot).
    x2d = jnp.pad(x2d, ((0, 0), (0, K1_PAD - IN_FEATURES)))

    # Effective batch tile: never larger than the (8-aligned) batch itself.
    bt = min(batch_tile, _round_up(B, 8))
    Bp = _round_up(B, bt)
    if Bp != B:
        x2d = jnp.pad(x2d, ((0, Bp - B), (0, 0)))

    (w1, b1), (w2, b2), (w3, b3), (w4, b4) = params
    # Torch layout (out, in) -> (in, out); bf16 operands; zero-pad fc1's K dim
    # and fc4's N dim. Biases stay f32 (added in the f32 epilogue).
    w1t = jnp.pad(w1.T.astype(jnp.bfloat16),
                  ((0, K1_PAD - IN_FEATURES), (0, 0)))
    w2t = w2.T.astype(jnp.bfloat16)
    w3t = w3.T.astype(jnp.bfloat16)
    w4t = jnp.pad(w4.T.astype(jnp.bfloat16),
                  ((0, 0), (0, OUT_PAD - OUT_FEATURES)))
    b1r = b1.reshape(1, -1).astype(jnp.float32)
    b2r = b2.reshape(1, -1).astype(jnp.float32)
    b3r = b3.reshape(1, -1).astype(jnp.float32)
    b4r = jnp.pad(b4.reshape(1, -1).astype(jnp.float32),
                  ((0, 0), (0, OUT_PAD - OUT_FEATURES)))

    grid = (Bp // bt,)

    def batch_map(i):
        return (i, 0)

    def whole_map(i):
        return (0, 0)

    weight_specs = [pl.BlockSpec(w.shape, whole_map)
                    for w in (w1t, b1r, w2t, b2r, w3t, b3r, w4t, b4r)]

    # Advisory cost estimate for XLA's scheduler.
    matmul_flops = 2 * Bp * (K1_PAD * H1 + H1 * H2 + H2 * H3 + H3 * OUT_PAD)
    weight_bytes = 2 * (K1_PAD * H1 + H1 * H2 + H2 * H3 + H3 * OUT_PAD)
    bias_bytes = 4 * (H1 + H2 + H3 + OUT_PAD)
    bytes_accessed = (Bp * K1_PAD * 2) + weight_bytes + bias_bytes + (Bp * OUT_PAD * 4)
    cost = pl.CostEstimate(flops=matmul_flops, transcendentals=0,
                           bytes_accessed=bytes_accessed)

    out = pl.pallas_call(
        _mlp_kernel,
        out_shape=jax.ShapeDtypeStruct((Bp, OUT_PAD), jnp.float32),
        grid_spec=pltpu.PrefetchScalarGridSpec(
            num_scalar_prefetch=0,
            grid=grid,
            in_specs=[pl.BlockSpec((bt, K1_PAD), batch_map)] + weight_specs,
            out_specs=pl.BlockSpec((bt, OUT_PAD), batch_map),
        ),
        compiler_params=pltpu.CompilerParams(
            dimension_semantics=("parallel",),
        ),
        cost_estimate=cost,
    )(x2d, w1t, b1r, w2t, b2r, w3t, b3r, w4t, b4r)

    return out[:B, :OUT_FEATURES]


def init_params(key):
    """Deterministic params matching nn.Linear shapes: W is (out, in)."""
    dims = [(H1, IN_FEATURES), (H2, H1), (H3, H2), (OUT_FEATURES, H3)]
    params = []
    for i, (out_d, in_d) in enumerate(dims):
        kw, kb = jax.random.split(jax.random.fold_in(key, i))
        bound = 1.0 / jnp.sqrt(in_d)
        w = jax.random.uniform(kw, (out_d, in_d), jnp.float32, -bound, bound)
        b = jax.random.uniform(kb, (out_d,), jnp.float32, -bound, bound)
        params.append((w, b))
    return params


def reference_forward_f32(x, params):
    """Plain-JAX f32 reference identical to the PyTorch forward (eval mode)."""
    h = x.reshape(x.shape[0], IN_FEATURES)
    (w1, b1), (w2, b2), (w3, b3), (w4, b4) = params
    h = jnp.maximum(h @ w1.T + b1, 0.0)
    h = jnp.maximum(h @ w2.T + b2, 0.0)
    h = jnp.maximum(h @ w3.T + b3, 0.0)
    return h @ w4.T + b4


def reference_forward_bf16(x, params):
    """Reference with the same bf16-operand / f32-accumulate casting scheme."""
    (w1, b1), (w2, b2), (w3, b3), (w4, b4) = params
    h = x.reshape(x.shape[0], IN_FEATURES).astype(jnp.bfloat16)
    for w, b in ((w1, b1), (w2, b2), (w3, b3)):
        h = jnp.dot(h, w.T.astype(jnp.bfloat16),
                    preferred_element_type=jnp.float32) + b
        h = jnp.maximum(h, 0.0).astype(jnp.bfloat16)
    return jnp.dot(h, w4.T.astype(jnp.bfloat16),
                   preferred_element_type=jnp.float32) + b4


if __name__ == "__main__":
    key = jax.random.PRNGKey(0)
    kx, kp = jax.random.split(key)

    B = 32  # small batch; wrapper handles any B via padding to the batch tile
    x = jax.random.normal(kx, (B, 1, 28, 28), jnp.float32)  # NCHW like MNIST
    params = init_params(kp)

    y = dnn_forward(x, params)
    y = jax.block_until_ready(y)
    assert y.shape == (B, OUT_FEATURES)

    # Check against a reference that uses the same bf16-operand casting.
    y_ref = reference_forward_bf16(x, params)
    assert jnp.allclose(y, y_ref, atol=1e-2, rtol=1e-2), "mismatch vs bf16 reference"

    # Sanity vs the pure-f32 reference (loose tolerance due to bf16 operands).
    y_f32 = reference_forward_f32(x, params)
    assert jnp.allclose(y, y_f32, atol=1e-1, rtol=1e-1), "mismatch vs f32 reference"

    print("KERNEL_OK")
</pallas_src>

<mosaic_0001>
module attributes {stable_mosaic.version = 11 : i64} {
  func.func @_mlp_kernel(%arg0: i32, %arg1: memref<32x896xbf16, #tpu.memory_space<vmem>>, %arg2: memref<896x512xbf16, #tpu.memory_space<vmem>>, %arg3: memref<1x512xf32, #tpu.memory_space<vmem>>, %arg4: memref<512x256xbf16, #tpu.memory_space<vmem>>, %arg5: memref<1x256xf32, #tpu.memory_space<vmem>>, %arg6: memref<256x128xbf16, #tpu.memory_space<vmem>>, %arg7: memref<1x128xf32, #tpu.memory_space<vmem>>, %arg8: memref<128x128xbf16, #tpu.memory_space<vmem>>, %arg9: memref<1x128xf32, #tpu.memory_space<vmem>>, %arg10: memref<32x128xf32, #tpu.memory_space<vmem>>) attributes {dimension_semantics = [#tpu.dimension_semantics<parallel>], iteration_bounds = array<i64: 1>, scalar_prefetch = 0 : i64, scratch_operands = 0 : i64, tpu.core_type = #tpu.core_type<tc>, window_params = [{transform_indices = @transform_0, window_bounds = array<i64: 32, 896>}, {pipeline_mode = #tpu.pipeline_mode<synchronous>, transform_indices = @transform_1, window_bounds = array<i64: 896, 512>}, {pipeline_mode = #tpu.pipeline_mode<synchronous>, transform_indices = @transform_2, window_bounds = array<i64: 1, 512>}, {pipeline_mode = #tpu.pipeline_mode<synchronous>, transform_indices = @transform_3, window_bounds = array<i64: 512, 256>}, {pipeline_mode = #tpu.pipeline_mode<synchronous>, transform_indices = @transform_4, window_bounds = array<i64: 1, 256>}, {pipeline_mode = #tpu.pipeline_mode<synchronous>, transform_indices = @transform_5, window_bounds = array<i64: 256, 128>}, {pipeline_mode = #tpu.pipeline_mode<synchronous>, transform_indices = @transform_6, window_bounds = array<i64: 1, 128>}, {pipeline_mode = #tpu.pipeline_mode<synchronous>, transform_indices = @transform_7, window_bounds = array<i64: 128, 128>}, {pipeline_mode = #tpu.pipeline_mode<synchronous>, transform_indices = @transform_8, window_bounds = array<i64: 1, 128>}, {transform_indices = @transform_9, window_bounds = array<i64: 32, 128>}]} {
    %c0 = arith.constant 0 : index
    %c0_0 = arith.constant 0 : index
    %0 = vector.load %arg1[%c0, %c0_0] : memref<32x896xbf16, #tpu.memory_space<vmem>>, vector<32x896xbf16>
    %c0_1 = arith.constant 0 : index
    %c0_2 = arith.constant 0 : index
    %1 = vector.load %arg2[%c0_1, %c0_2] : memref<896x512xbf16, #tpu.memory_space<vmem>>, vector<896x512xbf16>
    %cst = arith.constant dense<0.000000e+00> : vector<32x512xf32>
    %2 = tpu.matmul %0, %1, %cst {dimension_numbers = #tpu.dot_dimension_numbers<[1], [0], [0], [1], [0, 0, 1, 1], [], []>} : vector<32x896xbf16>, vector<896x512xbf16>, vector<32x512xf32> -> vector<32x512xf32>
    %c0_3 = arith.constant 0 : index
    %c0_4 = arith.constant 0 : index
    %3 = vector.load %arg3[%c0_3, %c0_4] : memref<1x512xf32, #tpu.memory_space<vmem>>, vector<1x512xf32>
    %4 = vector.broadcast %3 : vector<1x512xf32> to vector<32x512xf32>
    %5 = arith.addf %2, %4 : vector<32x512xf32>
    %cst_5 = arith.constant 0.000000e+00 : f32
    %6 = vector.broadcast %cst_5 : f32 to vector<32x512xf32>
    %7 = arith.maximumf %5, %6 : vector<32x512xf32>
    %8 = arith.truncf %7 : vector<32x512xf32> to vector<32x512xbf16>
    %c0_6 = arith.constant 0 : index
    %c0_7 = arith.constant 0 : index
    %9 = vector.load %arg4[%c0_6, %c0_7] : memref<512x256xbf16, #tpu.memory_space<vmem>>, vector<512x256xbf16>
    %cst_8 = arith.constant dense<0.000000e+00> : vector<32x256xf32>
    %10 = tpu.matmul %8, %9, %cst_8 {dimension_numbers = #tpu.dot_dimension_numbers<[1], [0], [0], [1], [0, 0, 1, 1], [], []>} : vector<32x512xbf16>, vector<512x256xbf16>, vector<32x256xf32> -> vector<32x256xf32>
    %c0_9 = arith.constant 0 : index
    %c0_10 = arith.constant 0 : index
    %11 = vector.load %arg5[%c0_9, %c0_10] : memref<1x256xf32, #tpu.memory_space<vmem>>, vector<1x256xf32>
    %12 = vector.broadcast %11 : vector<1x256xf32> to vector<32x256xf32>
    %13 = arith.addf %10, %12 : vector<32x256xf32>
    %cst_11 = arith.constant 0.000000e+00 : f32
    %14 = vector.broadcast %cst_11 : f32 to vector<32x256xf32>
    %15 = arith.maximumf %13, %14 : vector<32x256xf32>
    %16 = arith.truncf %15 : vector<32x256xf32> to vector<32x256xbf16>
    %c0_12 = arith.constant 0 : index
    %c0_13 = arith.constant 0 : index
    %17 = vector.load %arg6[%c0_12, %c0_13] : memref<256x128xbf16, #tpu.memory_space<vmem>>, vector<256x128xbf16>
    %cst_14 = arith.constant dense<0.000000e+00> : vector<32x128xf32>
    %18 = tpu.matmul %16, %17, %cst_14 {dimension_numbers = #tpu.dot_dimension_numbers<[1], [0], [0], [1], [0, 0, 1, 1], [], []>} : vector<32x256xbf16>, vector<256x128xbf16>, vector<32x128xf32> -> vector<32x128xf32>
    %c0_15 = arith.constant 0 : index
    %c0_16 = arith.constant 0 : index
    %19 = vector.load %arg7[%c0_15, %c0_16] : memref<1x128xf32, #tpu.memory_space<vmem>>, vector<1x128xf32>
    %20 = vector.broadcast %19 : vector<1x128xf32> to vector<32x128xf32>
    %21 = arith.addf %18, %20 : vector<32x128xf32>
    %cst_17 = arith.constant 0.000000e+00 : f32
    %22 = vector.broadcast %cst_17 : f32 to vector<32x128xf32>
    %23 = arith.maximumf %21, %22 : vector<32x128xf32>
    %24 = arith.truncf %23 : vector<32x128xf32> to vector<32x128xbf16>
    %c0_18 = arith.constant 0 : index
    %c0_19 = arith.constant 0 : index
    %25 = vector.load %arg8[%c0_18, %c0_19] : memref<128x128xbf16, #tpu.memory_space<vmem>>, vector<128x128xbf16>
    %cst_20 = arith.constant dense<0.000000e+00> : vector<32x128xf32>
    %26 = tpu.matmul %24, %25, %cst_20 {dimension_numbers = #tpu.dot_dimension_numbers<[1], [0], [0], [1], [0, 0, 1, 1], [], []>} : vector<32x128xbf16>, vector<128x128xbf16>, vector<32x128xf32> -> vector<32x128xf32>
    %c0_21 = arith.constant 0 : index
    %c0_22 = arith.constant 0 : index
    %27 = vector.load %arg9[%c0_21, %c0_22] : memref<1x128xf32, #tpu.memory_space<vmem>>, vector<1x128xf32>
    %28 = vector.broadcast %27 : vector<1x128xf32> to vector<32x128xf32>
    %29 = arith.addf %26, %28 : vector<32x128xf32>
    %c0_23 = arith.constant 0 : index
    %c0_24 = arith.constant 0 : index
    %30 = vector.load %arg10[%c0_23, %c0_24] : memref<32x128xf32, #tpu.memory_space<vmem>>, vector<32x128xf32>
    tpu.vector_store %arg10[%c0_23, %c0_24], %29 {strides = array<i32>} : memref<32x128xf32, #tpu.memory_space<vmem>>, vector<32x128xf32>,
    return
  }
  func.func @transform_0(%arg0: i32) -> (i32, i32) {
    %c0_i32 = arith.constant 0 : i32
    %c0_i32_0 = arith.constant 0 : i32
    return %arg0, %c0_i32 : i32, i32
  }
  func.func @transform_1(%arg0: i32) -> (i32, i32) {
    %c0_i32 = arith.constant 0 : i32
    %c0_i32_0 = arith.constant 0 : i32
    %c0_i32_1 = arith.constant 0 : i32
    return %c0_i32, %c0_i32_0 : i32, i32
  }
  func.func @transform_2(%arg0: i32) -> (i32, i32) {
    %c0_i32 = arith.constant 0 : i32
    %c0_i32_0 = arith.constant 0 : i32
    %c0_i32_1 = arith.constant 0 : i32
    return %c0_i32, %c0_i32_0 : i32, i32
  }
  func.func @transform_3(%arg0: i32) -> (i32, i32) {
    %c0_i32 = arith.constant 0 : i32
    %c0_i32_0 = arith.constant 0 : i32
    %c0_i32_1 = arith.constant 0 : i32
    return %c0_i32, %c0_i32_0 : i32, i32
  }
  func.func @transform_4(%arg0: i32) -> (i32, i32) {
    %c0_i32 = arith.constant 0 : i32
    %c0_i32_0 = arith.constant 0 : i32
    %c0_i32_1 = arith.constant 0 : i32
    return %c0_i32, %c0_i32_0 : i32, i32
  }
  func.func @transform_5(%arg0: i32) -> (i32, i32) {
    %c0_i32 = arith.constant 0 : i32
    %c0_i32_0 = arith.constant 0 : i32
    %c0_i32_1 = arith.constant 0 : i32
    return %c0_i32, %c0_i32_0 : i32, i32
  }
  func.func @transform_6(%arg0: i32) -> (i32, i32) {
    %c0_i32 = arith.constant 0 : i32
    %c0_i32_0 = arith.constant 0 : i32
    %c0_i32_1 = arith.constant 0 : i32
    return %c0_i32, %c0_i32_0 : i32, i32
  }
  func.func @transform_7(%arg0: i32) -> (i32, i32) {
    %c0_i32 = arith.constant 0 : i32
    %c0_i32_0 = arith.constant 0 : i32
    %c0_i32_1 = arith.constant 0 : i32
    return %c0_i32, %c0_i32_0 : i32, i32
  }
  func.func @transform_8(%arg0: i32) -> (i32, i32) {
    %c0_i32 = arith.constant 0 : i32
    %c0_i32_0 = arith.constant 0 : i32
    %c0_i32_1 = arith.constant 0 : i32
    return %c0_i32, %c0_i32_0 : i32, i32
  }
  func.func @transform_9(%arg0: i32) -> (i32, i32) {
    %c0_i32 = arith.constant 0 : i32
    %c0_i32_0 = arith.constant 0 : i32
    return %arg0, %c0_i32 : i32, i32
  }
}

</mosaic_0001>

<llo_original>
// kernel: dnn_forward.1
$region0: #{dnn_forward.1}
  #allocation0 [shape = 'u32[]', space=smem, size = 0x4, offset = 0x4, fixed_abs, tag = 'smem constant byte address 0x4 - core index']
  #allocation1 [shape = 'u32[72,128]{1,0:T(1,128)}', space=vmem, size = 0x9000, scoped, tag = 'internal scratch']
  %s0 = inlined_call_operand.vmem [shape: bf16[32,896], index: 0, kind: input, shape index: {}]
  %s1 = inlined_call_operand.vmem [shape: bf16[896,512], index: 1, kind: input, shape index: {}]
  %s2 = inlined_call_operand.vmem [shape: f32[1,512], index: 2, kind: input, shape index: {}]
  %s3 = inlined_call_operand.vmem [shape: bf16[512,256], index: 3, kind: input, shape index: {}]
  %s4 = inlined_call_operand.vmem [shape: f32[1,256], index: 4, kind: input, shape index: {}]
  %s5 = inlined_call_operand.vmem [shape: bf16[256,128], index: 5, kind: input, shape index: {}]
  %s6 = inlined_call_operand.vmem [shape: f32[1,128], index: 6, kind: input, shape index: {}]
  %s7 = inlined_call_operand.vmem [shape: bf16[128,128], index: 7, kind: input, shape index: {}]
  %s8 = inlined_call_operand.vmem [shape: f32[1,128], index: 8, kind: input, shape index: {}]
  %s9 = inlined_call_operand.vmem [shape: f32[32,128], index: 9, kind: output, shape index: {}]
  %s10 = sld [smem:[#allocation0]]
  $region46: #{dnn_forward.1} parent=0
    _
  %s12 = ssub.s32 1, %s10
  %s13 = scalar_select 0, %s12, %s10
  // Predicated region
  $region2: #{dnn_forward.1} parent=0 // pred_check
    _
  $region3: #{dnn_forward.1} parent=0 // pred_check_branch
    %15 = sbr.rel (0) target = $region5
  $region4: #{dnn_forward.1} parent=0 // pred_region
    _
  $region5: #{dnn_forward.1} parent=0 // pred_fallthru
    _
  // Predicated region
  $region6: #{dnn_forward.1} parent=0 // pred_check
    _
  $region7: #{dnn_forward.1} parent=0 // pred_check_branch
    %17 = sbr.rel (0) target = $region9
  $region8: #{dnn_forward.1} parent=0 // pred_region
    _
  $region9: #{dnn_forward.1} parent=0 // pred_fallthru
    _
  // Predicated region
  $region10: #{dnn_forward.1} parent=0 // pred_check
    _
  $region11: #{dnn_forward.1} parent=0 // pred_check_branch
    %19 = sbr.rel (0) target = $region13
  $region12: #{dnn_forward.1} parent=0 // pred_region
    _
  $region13: #{dnn_forward.1} parent=0 // pred_fallthru
    _
  // Predicated region
  $region14: #{dnn_forward.1} parent=0 // pred_check
    _
  $region15: #{dnn_forward.1} parent=0 // pred_check_branch
    %21 = sbr.rel (0) target = $region17
  $region16: #{dnn_forward.1} parent=0 // pred_region
    _
  $region17: #{dnn_forward.1} parent=0 // pred_fallthru
    _
  // Predicated region
  $region18: #{dnn_forward.1} parent=0 // pred_check
    _
  $region19: #{dnn_forward.1} parent=0 // pred_check_branch
    %23 = sbr.rel (0) target = $region21
  $region20: #{dnn_forward.1} parent=0 // pred_region
    _
  $region21: #{dnn_forward.1} parent=0 // pred_fallthru
    _
  // Predicated region
  $region22: #{dnn_forward.1} parent=0 // pred_check
    _
  $region23: #{dnn_forward.1} parent=0 // pred_check_branch
    %25 = sbr.rel (0) target = $region25
  $region24: #{dnn_forward.1} parent=0 // pred_region
    _
  $region25: #{dnn_forward.1} parent=0 // pred_fallthru
    _
  // Predicated region
  $region26: #{dnn_forward.1} parent=0 // pred_check
    _
  $region27: #{dnn_forward.1} parent=0 // pred_check_branch
    %27 = sbr.rel (0) target = $region29
  $region28: #{dnn_forward.1} parent=0 // pred_region
    _
  $region29: #{dnn_forward.1} parent=0 // pred_fallthru
    _
  // Predicated region
  $region30: #{dnn_forward.1} parent=0 // pred_check
    _
  $region31: #{dnn_forward.1} parent=0 // pred_check_branch
    %29 = sbr.rel (0) target = $region33
  $region32: #{dnn_forward.1} parent=0 // pred_region
    _
  $region33: #{dnn_forward.1} parent=0 // pred_fallthru
    _
  // Predicated region
  $region34: #{dnn_forward.1} parent=0 // pred_check
    _
  $region35: #{dnn_forward.1} parent=0 // pred_check_branch
    %31 = sbr.rel (0) target = $region37
  $region36: #{dnn_forward.1} parent=0 // pred_region
    _
  $region37: #{dnn_forward.1} parent=0 // pred_fallthru
    _
  %v32 = vld [vmem:[%s0] sm:$0xff]
  %v33 = vld [vmem:[%s0 + $0x8] sm:$0xff]
  %v34 = vld [vmem:[%s0 + $0x10] sm:$0xff]
  %v35 = vld [vmem:[%s0 + $0x18] sm:$0xf]
  %v36 = vld [vmem:[%s0 + $0x1c] sm:$0xff]
  %v37 = vld [vmem:[%s0 + $0x24] sm:$0xff]
  %v38 = vld [vmem:[%s0 + $0x2c] sm:$0xff]
  %v39 = vld [vmem:[%s0 + $0x34] sm:$0xf]
  %v40 = vld [vmem:[%s0 + $0x38] sm:$0xff]
  %v41 = vld [vmem:[%s0 + $0x40] sm:$0xff]
  %v42 = vld [vmem:[%s0 + $0x48] sm:$0xff]
  %v43 = vld [vmem:[%s0 + $0x50] sm:$0xf]
  %v44 = vld [vmem:[%s0 + $0x54] sm:$0xff]
  %v45 = vld [vmem:[%s0 + $0x5c] sm:$0xff]
  %v46 = vld [vmem:[%s0 + $0x64] sm:$0xff]
  %v47 = vld [vmem:[%s0 + $0x6c] sm:$0xf]
  %v48 = vld [vmem:[%s1] sm:$0xff]
  %v49 = vld [vmem:[%s1 + $0x8] sm:$0xff]
  %v50 = vld [vmem:[%s1 + $0x10] sm:$0xff]
  %v51 = vld [vmem:[%s1 + $0x18] sm:$0xff]
  %v52 = vld [vmem:[%s1 + $0x20] sm:$0xff]
  %v53 = vld [vmem:[%s1 + $0x28] sm:$0xff]
  %v54 = vld [vmem:[%s1 + $0x30] sm:$0xff]
  %v55 = vld [vmem:[%s1 + $0x38] sm:$0xff]
  %v56 = vld [vmem:[%s1 + $0x40] sm:$0xff]
  %v57 = vld [vmem:[%s1 + $0x48] sm:$0xff]
  %v58 = vld [vmem:[%s1 + $0x50] sm:$0xff]
  %v59 = vld [vmem:[%s1 + $0x58] sm:$0xff]
  %v60 = vld [vmem:[%s1 + $0x60] sm:$0xff]
  %v61 = vld [vmem:[%s1 + $0x68] sm:$0xff]
  %v62 = vld [vmem:[%s1 + $0x70] sm:$0xff]
  %v63 = vld [vmem:[%s1 + $0x78] sm:$0xff]
  %v64 = vld [vmem:[%s1 + $0x80] sm:$0xff]
  %v65 = vld [vmem:[%s1 + $0x88] sm:$0xff]
  %v66 = vld [vmem:[%s1 + $0x90] sm:$0xff]
  %v67 = vld [vmem:[%s1 + $0x98] sm:$0xff]
  %v68 = vld [vmem:[%s1 + $0xa0] sm:$0xff]
  %v69 = vld [vmem:[%s1 + $0xa8] sm:$0xff]
  %v70 = vld [vmem:[%s1 + $0xb0] sm:$0xff]
  %v71 = vld [vmem:[%s1 + $0xb8] sm:$0xff]
  %v72 = vld [vmem:[%s1 + $0xc0] sm:$0xff]
  %v73 = vld [vmem:[%s1 + $0xc8] sm:$0xff]
  %v74 = vld [vmem:[%s1 + $0xd0] sm:$0xff]
  %v75 = vld [vmem:[%s1 + $0xd8] sm:$0xff]
  %v76 = vld [vmem:[%s1 + $0xe0] sm:$0xff]
  %v77 = vld [vmem:[%s1 + $0xe8] sm:$0xff]
  %v78 = vld [vmem:[%s1 + $0xf0] sm:$0xff]
  %v79 = vld [vmem:[%s1 + $0xf8] sm:$0xff]
  %v80 = vld [vmem:[%s1 + $0x100] sm:$0xff]
  %v81 = vld [vmem:[%s1 + $0x108] sm:$0xff]
  %v82 = vld [vmem:[%s1 + $0x110] sm:$0xff]
  %v83 = vld [vmem:[%s1 + $0x118] sm:$0xff]
  %v84 = vld [vmem:[%s1 + $0x120] sm:$0xff]
  %v85 = vld [vmem:[%s1 + $0x128] sm:$0xff]
  %v86 = vld [vmem:[%s1 + $0x130] sm:$0xff]
  %v87 = vld [vmem:[%s1 + $0x138] sm:$0xff]
  %v88 = vld [vmem:[%s1 + $0x140] sm:$0xff]
  %v89 = vld [vmem:[%s1 + $0x148] sm:$0xff]
  %v90 = vld [vmem:[%s1 + $0x150] sm:$0xff]
  %v91 = vld [vmem:[%s1 + $0x158] sm:$0xff]
  %v92 = vld [vmem:[%s1 + $0x160] sm:$0xff]
  %v93 = vld [vmem:[%s1 + $0x168] sm:$0xff]
  %v94 = vld [vmem:[%s1 + $0x170] sm:$0xff]
  %v95 = vld [vmem:[%s1 + $0x178] sm:$0xff]
  %v96 = vld [vmem:[%s1 + $0x180] sm:$0xff]
  %v97 = vld [vmem:[%s1 + $0x188] sm:$0xff]
  %v98 = vld [vmem:[%s1 + $0x190] sm:$0xff]
  %v99 = vld [vmem:[%s1 + $0x198] sm:$0xff]
  %v100 = vld [vmem:[%s1 + $0x1a0] sm:$0xff]
  %v101 = vld [vmem:[%s1 + $0x1a8] sm:$0xff]
  %v102 = vld [vmem:[%s1 + $0x1b0] sm:$0xff]
  %v103 = vld [vmem:[%s1 + $0x1b8] sm:$0xff]
  %v104 = vld [vmem:[%s1 + $0x1c0] sm:$0xff]
  %v105 = vld [vmem:[%s1 + $0x1c8] sm:$0xff]
  %v106 = vld [vmem:[%s1 + $0x1d0] sm:$0xff]
  %v107 = vld [vmem:[%s1 + $0x1d8] sm:$0xff]
  %v108 = vld [vmem:[%s1 + $0x1e0] sm:$0xff]
  %v109 = vld [vmem:[%s1 + $0x1e8] sm:$0xff]
  %v110 = vld [vmem:[%s1 + $0x1f0] sm:$0xff]
  %v111 = vld [vmem:[%s1 + $0x1f8] sm:$0xff]
  %v112 = vld [vmem:[%s1 + $0x200] sm:$0xff]
  %v113 = vld [vmem:[%s1 + $0x208] sm:$0xff]
  %v114 = vld [vmem:[%s1 + $0x210] sm:$0xff]
  %v115 = vld [vmem:[%s1 + $0x218] sm:$0xff]
  %v116 = vld [vmem:[%s1 + $0x220] sm:$0xff]
  %v117 = vld [vmem:[%s1 + $0x228] sm:$0xff]
  %v118 = vld [vmem:[%s1 + $0x230] sm:$0xff]
  %v119 = vld [vmem:[%s1 + $0x238] sm:$0xff]
  %v120 = vld [vmem:[%s1 + $0x240] sm:$0xff]
  %v121 = vld [vmem:[%s1 + $0x248] sm:$0xff]
  %v122 = vld [vmem:[%s1 + $0x250] sm:$0xff]
  %v123 = vld [vmem:[%s1 + $0x258] sm:$0xff]
  %v124 = vld [vmem:[%s1 + $0x260] sm:$0xff]
  %v125 = vld [vmem:[%s1 + $0x268] sm:$0xff]
  %v126 = vld [vmem:[%s1 + $0x270] sm:$0xff]
  %v127 = vld [vmem:[%s1 + $0x278] sm:$0xff]
  %v128 = vld [vmem:[%s1 + $0x280] sm:$0xff]
  %v129 = vld [vmem:[%s1 + $0x288] sm:$0xff]
  %v130 = vld [vmem:[%s1 + $0x290] sm:$0xff]
  %v131 = vld [vmem:[%s1 + $0x298] sm:$0xff]
  %v132 = vld [vmem:[%s1 + $0x2a0] sm:$0xff]
  %v133 = vld [vmem:[%s1 + $0x2a8] sm:$0xff]
  %v134 = vld [vmem:[%s1 + $0x2b0] sm:$0xff]
  %v135 = vld [vmem:[%s1 + $0x2b8] sm:$0xff]
  %v136 = vld [vmem:[%s1 + $0x2c0] sm:$0xff]
  %v137 = vld [vmem:[%s1 + $0x2c8] sm:$0xff]
  %v138 = vld [vmem:[%s1 + $0x2d0] sm:$0xff]
  %v139 = vld [vmem:[%s1 + $0x2d8] sm:$0xff]
  %v140 = vld [vmem:[%s1 + $0x2e0] sm:$0xff]
  %v141 = vld [vmem:[%s1 + $0x2e8] sm:$0xff]
  %v142 = vld [vmem:[%s1 + $0x2f0] sm:$0xff]
  %v143 = vld [vmem:[%s1 + $0x2f8] sm:$0xff]
  %v144 = vld [vmem:[%s1 + $0x300] sm:$0xff]
  %v145 = vld [vmem:[%s1 + $0x308] sm:$0xff]
  %v146 = vld [vmem:[%s1 + $0x310] sm:$0xff]
  %v147 = vld [vmem:[%s1 + $0x318] sm:$0xff]
  %v148 = vld [vmem:[%s1 + $0x320] sm:$0xff]
  %v149 = vld [vmem:[%s1 + $0x328] sm:$0xff]
  %v150 = vld [vmem:[%s1 + $0x330] sm:$0xff]
  %v151 = vld [vmem:[%s1 + $0x338] sm:$0xff]
  %v152 = vld [vmem:[%s1 + $0x340] sm:$0xff]
  %v153 = vld [vmem:[%s1 + $0x348] sm:$0xff]
  %v154 = vld [vmem:[%s1 + $0x350] sm:$0xff]
  %v155 = vld [vmem:[%s1 + $0x358] sm:$0xff]
  %v156 = vld [vmem:[%s1 + $0x360] sm:$0xff]
  %v157 = vld [vmem:[%s1 + $0x368] sm:$0xff]
  %v158 = vld [vmem:[%s1 + $0x370] sm:$0xff]
  %v159 = vld [vmem:[%s1 + $0x378] sm:$0xff]
  %v160 = vld [vmem:[%s1 + $0x380] sm:$0xff]
  %v161 = vld [vmem:[%s1 + $0x388] sm:$0xff]
  %v162 = vld [vmem:[%s1 + $0x390] sm:$0xff]
  %v163 = vld [vmem:[%s1 + $0x398] sm:$0xff]
  %v164 = vld [vmem:[%s1 + $0x3a0] sm:$0xff]
  %v165 = vld [vmem:[%s1 + $0x3a8] sm:$0xff]
  %v166 = vld [vmem:[%s1 + $0x3b0] sm:$0xff]
  %v167 = vld [vmem:[%s1 + $0x3b8] sm:$0xff]
  %v168 = vld [vmem:[%s1 + $0x3c0] sm:$0xff]
  %v169 = vld [vmem:[%s1 + $0x3c8] sm:$0xff]
  %v170 = vld [vmem:[%s1 + $0x3d0] sm:$0xff]
  %v171 = vld [vmem:[%s1 + $0x3d8] sm:$0xff]
  %v172 = vld [vmem:[%s1 + $0x3e0] sm:$0xff]
  %v173 = vld [vmem:[%s1 + $0x3e8] sm:$0xff]
  %v174 = vld [vmem:[%s1 + $0x3f0] sm:$0xff]
  %v175 = vld [vmem:[%s1 + $0x3f8] sm:$0xff]
  %v176 = vld [vmem:[%s1 + $0x400] sm:$0xff]
  %v177 = vld [vmem:[%s1 + $0x408] sm:$0xff]
  %v178 = vld [vmem:[%s1 + $0x410] sm:$0xff]
  %v179 = vld [vmem:[%s1 + $0x418] sm:$0xff]
  %v180 = vld [vmem:[%s1 + $0x420] sm:$0xff]
  %v181 = vld [vmem:[%s1 + $0x428] sm:$0xff]
  %v182 = vld [vmem:[%s1 + $0x430] sm:$0xff]
  %v183 = vld [vmem:[%s1 + $0x438] sm:$0xff]
  %v184 = vld [vmem:[%s1 + $0x440] sm:$0xff]
  %v185 = vld [vmem:[%s1 + $0x448] sm:$0xff]
  %v186 = vld [vmem:[%s1 + $0x450] sm:$0xff]
  %v187 = vld [vmem:[%s1 + $0x458] sm:$0xff]
  %v188 = vld [vmem:[%s1 + $0x460] sm:$0xff]
  %v189 = vld [vmem:[%s1 + $0x468] sm:$0xff]
  %v190 = vld [vmem:[%s1 + $0x470] sm:$0xff]
  %v191 = vld [vmem:[%s1 + $0x478] sm:$0xff]
  %v192 = vld [vmem:[%s1 + $0x480] sm:$0xff]
  %v193 = vld [vmem:[%s1 + $0x488] sm:$0xff]
  %v194 = vld [vmem:[%s1 + $0x490] sm:$0xff]
  %v195 = vld [vmem:[%s1 + $0x498] sm:$0xff]
  %v196 = vld [vmem:[%s1 + $0x4a0] sm:$0xff]
  %v197 = vld [vmem:[%s1 + $0x4a8] sm:$0xff]
  %v198 = vld [vmem:[%s1 + $0x4b0] sm:$0xff]
  %v199 = vld [vmem:[%s1 + $0x4b8] sm:$0xff]
  %v200 = vld [vmem:[%s1 + $0x4c0] sm:$0xff]
  %v201 = vld [vmem:[%s1 + $0x4c8] sm:$0xff]
  %v202 = vld [vmem:[%s1 + $0x4d0] sm:$0xff]
  %v203 = vld [vmem:[%s1 + $0x4d8] sm:$0xff]
  %v204 = vld [vmem:[%s1 + $0x4e0] sm:$0xff]
  %v205 = vld [vmem:[%s1 + $0x4e8] sm:$0xff]
  %v206 = vld [vmem:[%s1 + $0x4f0] sm:$0xff]
  %v207 = vld [vmem:[%s1 + $0x4f8] sm:$0xff]
  %v208 = vld [vmem:[%s1 + $0x500] sm:$0xff]
  %v209 = vld [vmem:[%s1 + $0x508] sm:$0xff]
  %v210 = vld [vmem:[%s1 + $0x510] sm:$0xff]
  %v211 = vld [vmem:[%s1 + $0x518] sm:$0xff]
  %v212 = vld [vmem:[%s1 + $0x520] sm:$0xff]
  %v213 = vld [vmem:[%s1 + $0x528] sm:$0xff]
  %v214 = vld [vmem:[%s1 + $0x530] sm:$0xff]
  %v215 = vld [vmem:[%s1 + $0x538] sm:$0xff]
  %v216 = vld [vmem:[%s1 + $0x540] sm:$0xff]
  %v217 = vld [vmem:[%s1 + $0x548] sm:$0xff]
  %v218 = vld [vmem:[%s1 + $0x550] sm:$0xff]
  %v219 = vld [vmem:[%s1 + $0x558] sm:$0xff]
  %v220 = vld [vmem:[%s1 + $0x560] sm:$0xff]
  %v221 = vld [vmem:[%s1 + $0x568] sm:$0xff]
  %v222 = vld [vmem:[%s1 + $0x570] sm:$0xff]
  %v223 = vld [vmem:[%s1 + $0x578] sm:$0xff]
  %v224 = vld [vmem:[%s1 + $0x580] sm:$0xff]
  %v225 = vld [vmem:[%s1 + $0x588] sm:$0xff]
  %v226 = vld [vmem:[%s1 + $0x590] sm:$0xff]
  %v227 = vld [vmem:[%s1 + $0x598] sm:$0xff]
  %v228 = vld [vmem:[%s1 + $0x5a0] sm:$0xff]
  %v229 = vld [vmem:[%s1 + $0x5a8] sm:$0xff]
  %v230 = vld [vmem:[%s1 + $0x5b0] sm:$0xff]
  %v231 = vld [vmem:[%s1 + $0x5b8] sm:$0xff]
  %v232 = vld [vmem:[%s1 + $0x5c0] sm:$0xff]
  %v233 = vld [vmem:[%s1 + $0x5c8] sm:$0xff]
  %v234 = vld [vmem:[%s1 + $0x5d0] sm:$0xff]
  %v235 = vld [vmem:[%s1 + $0x5d8] sm:$0xff]
  %v236 = vld [vmem:[%s1 + $0x5e0] sm:$0xff]
  %v237 = vld [vmem:[%s1 + $0x5e8] sm:$0xff]
  %v238 = vld [vmem:[%s1 + $0x5f0] sm:$0xff]
  %v239 = vld [vmem:[%s1 + $0x5f8] sm:$0xff]
  %v240 = vld [vmem:[%s1 + $0x600] sm:$0xff]
  %v241 = vld [vmem:[%s1 + $0x608] sm:$0xff]
  %v242 = vld [vmem:[%s1 + $0x610] sm:$0xff]
  %v243 = vld [vmem:[%s1 + $0x618] sm:$0xff]
  %v244 = vld [vmem:[%s1 + $0x620] sm:$0xff]
  %v245 = vld [vmem:[%s1 + $0x628] sm:$0xff]
  %v246 = vld [vmem:[%s1 + $0x630] sm:$0xff]
  %v247 = vld [vmem:[%s1 + $0x638] sm:$0xff]
  %v248 = vld [vmem:[%s1 + $0x640] sm:$0xff]
  %v249 = vld [vmem:[%s1 + $0x648] sm:$0xff]
  %v250 = vld [vmem:[%s1 + $0x650] sm:$0xff]
  %v251 = vld [vmem:[%s1 + $0x658] sm:$0xff]
  %v252 = vld [vmem:[%s1 + $0x660] sm:$0xff]
  %v253 = vld [vmem:[%s1 + $0x668] sm:$0xff]
  %v254 = vld [vmem:[%s1 + $0x670] sm:$0xff]
  %v255 = vld [vmem:[%s1 + $0x678] sm:$0xff]
  %v256 = vld [vmem:[%s1 + $0x680] sm:$0xff]
  %v257 = vld [vmem:[%s1 + $0x688] sm:$0xff]
  %v258 = vld [vmem:[%s1 + $0x690] sm:$0xff]
  %v259 = vld [vmem:[%s1 + $0x698] sm:$0xff]
  %v260 = vld [vmem:[%s1 + $0x6a0] sm:$0xff]
  %v261 = vld [vmem:[%s1 + $0x6a8] sm:$0xff]
  %v262 = vld [vmem:[%s1 + $0x6b0] sm:$0xff]
  %v263 = vld [vmem:[%s1 + $0x6b8] sm:$0xff]
  %v264 = vld [vmem:[%s1 + $0x6c0] sm:$0xff]
  %v265 = vld [vmem:[%s1 + $0x6c8] sm:$0xff]
  %v266 = vld [vmem:[%s1 + $0x6d0] sm:$0xff]
  %v267 = vld [vmem:[%s1 + $0x6d8] sm:$0xff]
  %v268 = vld [vmem:[%s1 + $0x6e0] sm:$0xff]
  %v269 = vld [vmem:[%s1 + $0x6e8] sm:$0xff]
  %v270 = vld [vmem:[%s1 + $0x6f0] sm:$0xff]
  %v271 = vld [vmem:[%s1 + $0x6f8] sm:$0xff]
  %v272 = vld [vmem:[%s2] sm:$0xf]
  %v274 = vperm.slane %v272, 0
  %v275 = vperm.slane %v272, 1
  %v276 = vperm.slane %v272, 2
  %v277 = vperm.slane %v272, 3
  %v298 = vunpack.c.l.b16 %v32
  %v299 = vunpack.c.h.b16 %v32
  %v300 = vunpack.c.l.b16 %v33
  %v301 = vunpack.c.h.b16 %v33
  %v302 = vunpack.c.l.b16 %v34
  %v303 = vunpack.c.h.b16 %v34
  %v304 = vunpack.c.l.b16 %v35
  %v305 = vunpack.c.l.b16 %v36
  %v306 = vunpack.c.h.b16 %v36
  %v307 = vunpack.c.l.b16 %v37
  %v308 = vunpack.c.h.b16 %v37
  %v309 = vunpack.c.l.b16 %v38
  %v310 = vunpack.c.h.b16 %v38
  %v311 = vunpack.c.l.b16 %v39
  %v312 = vunpack.c.l.b16 %v40
  %v313 = vunpack.c.h.b16 %v40
  %v314 = vunpack.c.l.b16 %v41
  %v315 = vunpack.c.h.b16 %v41
  %v316 = vunpack.c.l.b16 %v42
  %v317 = vunpack.c.h.b16 %v42
  %v318 = vunpack.c.l.b16 %v43
  %v319 = vunpack.c.l.b16 %v44
  %v320 = vunpack.c.h.b16 %v44
  %v321 = vunpack.c.l.b16 %v45
  %v322 = vunpack.c.h.b16 %v45
  %v323 = vunpack.c.l.b16 %v46
  %v324 = vunpack.c.h.b16 %v46
  %v325 = vunpack.c.l.b16 %v47
  %v326 = vpack.c.b16 %v305, %v298
  %v327 = vpack.c.b16 %v306, %v299
  %v328 = vpack.c.b16 %v307, %v300
  %v329 = vpack.c.b16 %v308, %v301
  %v330 = vpack.c.b16 %v309, %v302
  %v331 = vpack.c.b16 %v310, %v303
  %v332 = vpack.c.b16 %v311, %v304
  %v333 = vpack.c.b16 %v319, %v312
  %v334 = vpack.c.b16 %v320, %v313
  %v335 = vpack.c.b16 %v321, %v314
  %v336 = vpack.c.b16 %v322, %v315
  %v337 = vpack.c.b16 %v323, %v316
  %v338 = vpack.c.b16 %v324, %v317
  %v339 = vpack.c.b16 %v325, %v318
  %v578 = vunpack.c.l.b16 %v48
  %v579 = vunpack.c.h.b16 %v48
  %v580 = vunpack.c.l.b16 %v49
  %v581 = vunpack.c.h.b16 %v49
  %v582 = vunpack.c.l.b16 %v50
  %v583 = vunpack.c.h.b16 %v50
  %v584 = vunpack.c.l.b16 %v51
  %v585 = vunpack.c.h.b16 %v51
  %v586 = vunpack.c.l.b16 %v52
  %v587 = vunpack.c.h.b16 %v52
  %v588 = vunpack.c.l.b16 %v53
  %v589 = vunpack.c.h.b16 %v53
  %v590 = vunpack.c.l.b16 %v54
  %v591 = vunpack.c.h.b16 %v54
  %v592 = vunpack.c.l.b16 %v55
  %v593 = vunpack.c.h.b16 %v55
  %v594 = vunpack.c.l.b16 %v56
  %v595 = vunpack.c.h.b16 %v56
  %v596 = vunpack.c.l.b16 %v57
  %v597 = vunpack.c.h.b16 %v57
  %v598 = vunpack.c.l.b16 %v58
  %v599 = vunpack.c.h.b16 %v58
  %v600 = vunpack.c.l.b16 %v59
  %v601 = vunpack.c.h.b16 %v59
  %v602 = vunpack.c.l.b16 %v60
  %v603 = vunpack.c.h.b16 %v60
  %v604 = vunpack.c.l.b16 %v61
  %v605 = vunpack.c.h.b16 %v61
  %v606 = vunpack.c.l.b16 %v62
  %v607 = vunpack.c.h.b16 %v62
  %v608 = vunpack.c.l.b16 %v63
  %v609 = vunpack.c.h.b16 %v63
  %v610 = vunpack.c.l.b16 %v64
  %v611 = vunpack.c.h.b16 %v64
  %v612 = vunpack.c.l.b16 %v65
  %v613 = vunpack.c.h.b16 %v65
  %v614 = vunpack.c.l.b16 %v66
  %v615 = vunpack.c.h.b16 %v66
  %v616 = vunpack.c.l.b16 %v67
  %v617 = vunpack.c.h.b16 %v67
  %v618 = vunpack.c.l.b16 %v68
  %v619 = vunpack.c.h.b16 %v68
  %v620 = vunpack.c.l.b16 %v69
  %v621 = vunpack.c.h.b16 %v69
  %v622 = vunpack.c.l.b16 %v70
  %v623 = vunpack.c.h.b16 %v70
  %v624 = vunpack.c.l.b16 %v71
  %v625 = vunpack.c.h.b16 %v71
  %v626 = vunpack.c.l.b16 %v72
  %v627 = vunpack.c.h.b16 %v72
  %v628 = vunpack.c.l.b16 %v73
  %v629 = vunpack.c.h.b16 %v73
  %v630 = vunpack.c.l.b16 %v74
  %v631 = vunpack.c.h.b16 %v74
  %v632 = vunpack.c.l.b16 %v75
  %v633 = vunpack.c.h.b16 %v75
  %v634 = vunpack.c.l.b16 %v76
  %v635 = vunpack.c.h.b16 %v76
  %v636 = vunpack.c.l.b16 %v77
  %v637 = vunpack.c.h.b16 %v77
  %v638 = vunpack.c.l.b16 %v78
  %v639 = vunpack.c.h.b16 %v78
  %v640 = vunpack.c.l.b16 %v79
  %v641 = vunpack.c.h.b16 %v79
  %v642 = vunpack.c.l.b16 %v80
  %v643 = vunpack.c.h.b16 %v80
  %v644 = vunpack.c.l.b16 %v81
  %v645 = vunpack.c.h.b16 %v81
  %v646 = vunpack.c.l.b16 %v82
  %v647 = vunpack.c.h.b16 %v82
  %v648 = vunpack.c.l.b16 %v83
  %v649 = vunpack.c.h.b16 %v83
  %v650 = vunpack.c.l.b16 %v84
  %v651 = vunpack.c.h.b16 %v84
  %v652 = vunpack.c.l.b16 %v85
  %v653 = vunpack.c.h.b16 %v85
  %v654 = vunpack.c.l.b16 %v86
  %v655 = vunpack.c.h.b16 %v86
  %v656 = vunpack.c.l.b16 %v87
  %v657 = vunpack.c.h.b16 %v87
  %v658 = vunpack.c.l.b16 %v88
  %v659 = vunpack.c.h.b16 %v88
  %v660 = vunpack.c.l.b16 %v89
  %v661 = vunpack.c.h.b16 %v89
  %v662 = vunpack.c.l.b16 %v90
  %v663 = vunpack.c.h.b16 %v90
  %v664 = vunpack.c.l.b16 %v91
  %v665 = vunpack.c.h.b16 %v91
  %v666 = vunpack.c.l.b16 %v92
  %v667 = vunpack.c.h.b16 %v92
  %v668 = vunpack.c.l.b16 %v93
  %v669 = vunpack.c.h.b16 %v93
  %v670 = vunpack.c.l.b16 %v94
  %v671 = vunpack.c.h.b16 %v94
  %v672 = vunpack.c.l.b16 %v95
  %v673 = vunpack.c.h.b16 %v95
  %v674 = vunpack.c.l.b16 %v96
  %v675 = vunpack.c.h.b16 %v96
  %v676 = vunpack.c.l.b16 %v97
  %v677 = vunpack.c.h.b16 %v97
  %v678 = vunpack.c.l.b16 %v98
  %v679 = vunpack.c.h.b16 %v98
  %v680 = vunpack.c.l.b16 %v99
  %v681 = vunpack.c.h.b16 %v99
  %v682 = vunpack.c.l.b16 %v100
  %v683 = vunpack.c.h.b16 %v100
  %v684 = vunpack.c.l.b16 %v101
  %v685 = vunpack.c.h.b16 %v101
  %v686 = vunpack.c.l.b16 %v102
  %v687 = vunpack.c.h.b16 %v102
  %v688 = vunpack.c.l.b16 %v103
  %v689 = vunpack.c.h.b16 %v103
  %v690 = vunpack.c.l.b16 %v104
  %v691 = vunpack.c.h.b16 %v104
  %v692 = vunpack.c.l.b16 %v105
  %v693 = vunpack.c.h.b16 %v105
  %v694 = vunpack.c.l.b16 %v106
  %v695 = vunpack.c.h.b16 %v106
  %v696 = vunpack.c.l.b16 %v107
  %v697 = vunpack.c.h.b16 %v107
  %v698 = vunpack.c.l.b16 %v108
  %v699 = vunpack.c.h.b16 %v108
  %v700 = vunpack.c.l.b16 %v109
  %v701 = vunpack.c.h.b16 %v109
  %v702 = vunpack.c.l.b16 %v110
  %v703 = vunpack.c.h.b16 %v110
  %v704 = vunpack.c.l.b16 %v111
  %v705 = vunpack.c.h.b16 %v111
  %v706 = vunpack.c.l.b16 %v112
  %v707 = vunpack.c.h.b16 %v112
  %v708 = vunpack.c.l.b16 %v113
  %v709 = vunpack.c.h.b16 %v113
  %v710 = vunpack.c.l.b16 %v114
  %v711 = vunpack.c.h.b16 %v114
  %v712 = vunpack.c.l.b16 %v115
  %v713 = vunpack.c.h.b16 %v115
  %v714 = vunpack.c.l.b16 %v116
  %v715 = vunpack.c.h.b16 %v116
  %v716 = vunpack.c.l.b16 %v117
  %v717 = vunpack.c.h.b16 %v117
  %v718 = vunpack.c.l.b16 %v118
  %v719 = vunpack.c.h.b16 %v118
  %v720 = vunpack.c.l.b16 %v119
  %v721 = vunpack.c.h.b16 %v119
  %v722 = vunpack.c.l.b16 %v120
  %v723 = vunpack.c.h.b16 %v120
  %v724 = vunpack.c.l.b16 %v121
  %v725 = vunpack.c.h.b16 %v121
  %v726 = vunpack.c.l.b16 %v122
  %v727 = vunpack.c.h.b16 %v122
  %v728 = vunpack.c.l.b16 %v123
  %v729 = vunpack.c.h.b16 %v123
  %v730 = vunpack.c.l.b16 %v124
  %v731 = vunpack.c.h.b16 %v124
  %v732 = vunpack.c.l.b16 %v125
  %v733 = vunpack.c.h.b16 %v125
  %v734 = vunpack.c.l.b16 %v126
  %v735 = vunpack.c.h.b16 %v126
  %v736 = vunpack.c.l.b16 %v127
  %v737 = vunpack.c.h.b16 %v127
  %v738 = vunpack.c.l.b16 %v128
  %v739 = vunpack.c.h.b16 %v128
  %v740 = vunpack.c.l.b16 %v129
  %v741 = vunpack.c.h.b16 %v129
  %v742 = vunpack.c.l.b16 %v130
  %v743 = vunpack.c.h.b16 %v130
  %v744 = vunpack.c.l.b16 %v131
  %v745 = vunpack.c.h.b16 %v131
  %v746 = vunpack.c.l.b16 %v132
  %v747 = vunpack.c.h.b16 %v132
  %v748 = vunpack.c.l.b16 %v133
  %v749 = vunpack.c.h.b16 %v133
  %v750 = vunpack.c.l.b16 %v134
  %v751 = vunpack.c.h.b16 %v134
  %v752 = vunpack.c.l.b16 %v135
  %v753 = vunpack.c.h.b16 %v135
  %v754 = vunpack.c.l.b16 %v136
  %v755 = vunpack.c.h.b16 %v136
  %v756 = vunpack.c.l.b16 %v137
  %v757 = vunpack.c.h.b16 %v137
  %v758 = vunpack.c.l.b16 %v138
  %v759 = vunpack.c.h.b16 %v138
  %v760 = vunpack.c.l.b16 %v139
  %v761 = vunpack.c.h.b16 %v139
  %v762 = vunpack.c.l.b16 %v140
  %v763 = vunpack.c.h.b16 %v140
  %v764 = vunpack.c.l.b16 %v141
  %v765 = vunpack.c.h.b16 %v141
  %v766 = vunpack.c.l.b16 %v142
  %v767 = vunpack.c.h.b16 %v142
  %v768 = vunpack.c.l.b16 %v143
  %v769 = vunpack.c.h.b16 %v143
  %v770 = vunpack.c.l.b16 %v144
  %v771 = vunpack.c.h.b16 %v144
  %v772 = vunpack.c.l.b16 %v145
  %v773 = vunpack.c.h.b16 %v145
  %v774 = vunpack.c.l.b16 %v146
  %v775 = vunpack.c.h.b16 %v146
  %v776 = vunpack.c.l.b16 %v147
  %v777 = vunpack.c.h.b16 %v147
  %v778 = vunpack.c.l.b16 %v148
  %v779 = vunpack.c.h.b16 %v148
  %v780 = vunpack.c.l.b16 %v149
  %v781 = vunpack.c.h.b16 %v149
  %v782 = vunpack.c.l.b16 %v150
  %v783 = vunpack.c.h.b16 %v150
  %v784 = vunpack.c.l.b16 %v151
  %v785 = vunpack.c.h.b16 %v151
  %v786 = vunpack.c.l.b16 %v152
  %v787 = vunpack.c.h.b16 %v152
  %v788 = vunpack.c.l.b16 %v153
  %v789 = vunpack.c.h.b16 %v153
  %v790 = vunpack.c.l.b16 %v154
  %v791 = vunpack.c.h.b16 %v154
  %v792 = vunpack.c.l.b16 %v155
  %v793 = vunpack.c.h.b16 %v155
  %v794 = vunpack.c.l.b16 %v156
  %v795 = vunpack.c.h.b16 %v156
  %v796 = vunpack.c.l.b16 %v157
  %v797 = vunpack.c.h.b16 %v157
  %v798 = vunpack.c.l.b16 %v158
  %v799 = vunpack.c.h.b16 %v158
  %v800 = vunpack.c.l.b16 %v159
  %v801 = vunpack.c.h.b16 %v159
  %v802 = vunpack.c.l.b16 %v160
  %v803 = vunpack.c.h.b16 %v160
  %v804 = vunpack.c.l.b16 %v161
  %v805 = vunpack.c.h.b16 %v161
  %v806 = vunpack.c.l.b16 %v162
  %v807 = vunpack.c.h.b16 %v162
  %v808 = vunpack.c.l.b16 %v163
  %v809 = vunpack.c.h.b16 %v163
  %v810 = vunpack.c.l.b16 %v164
  %v811 = vunpack.c.h.b16 %v164
  %v812 = vunpack.c.l.b16 %v165
  %v813 = vunpack.c.h.b16 %v165
  %v814 = vunpack.c.l.b16 %v166
  %v815 = vunpack.c.h.b16 %v166
  %v816 = vunpack.c.l.b16 %v167
  %v817 = vunpack.c.h.b16 %v167
  %v818 = vunpack.c.l.b16 %v168
  %v819 = vunpack.c.h.b16 %v168
  %v820 = vunpack.c.l.b16 %v169
  %v821 = vunpack.c.h.b16 %v169
  %v822 = vunpack.c.l.b16 %v170
  %v823 = vunpack.c.h.b16 %v170
  %v824 = vunpack.c.l.b16 %v171
  %v825 = vunpack.c.h.b16 %v171
  %v826 = vunpack.c.l.b16 %v172
  %v827 = vunpack.c.h.b16 %v172
  %v828 = vunpack.c.l.b16 %v173
  %v829 = vunpack.c.h.b16 %v173
  %v830 = vunpack.c.l.b16 %v174
  %v831 = vunpack.c.h.b16 %v174
  %v832 = vunpack.c.l.b16 %v175
  %v833 = vunpack.c.h.b16 %v175
  %v834 = vunpack.c.l.b16 %v176
  %v835 = vunpack.c.h.b16 %v176
  %v836 = vunpack.c.l.b16 %v177
  %v837 = vunpack.c.h.b16 %v177
  %v838 = vunpack.c.l.b16 %v178
  %v839 = vunpack.c.h.b16 %v178
  %v840 = vunpack.c.l.b16 %v179
  %v841 = vunpack.c.h.b16 %v179
  %v842 = vunpack.c.l.b16 %v180
  %v843 = vunpack.c.h.b16 %v180
  %v844 = vunpack.c.l.b16 %v181
  %v845 = vunpack.c.h.b16 %v181
  %v846 = vunpack.c.l.b16 %v182
  %v847 = vunpack.c.h.b16 %v182
  %v848 = vunpack.c.l.b16 %v183
  %v849 = vunpack.c.h.b16 %v183
  %v850 = vunpack.c.l.b16 %v184
  %v851 = vunpack.c.h.b16 %v184
  %v852 = vunpack.c.l.b16 %v185
  %v853 = vunpack.c.h.b16 %v185
  %v854 = vunpack.c.l.b16 %v186
  %v855 = vunpack.c.h.b16 %v186
  %v856 = vunpack.c.l.b16 %v187
  %v857 = vunpack.c.h.b16 %v187
  %v858 = vunpack.c.l.b16 %v188
  %v859 = vunpack.c.h.b16 %v188
  %v860 = vunpack.c.l.b16 %v189
  %v861 = vunpack.c.h.b16 %v189
  %v862 = vunpack.c.l.b16 %v190
  %v863 = vunpack.c.h.b16 %v190
  %v864 = vunpack.c.l.b16 %v191
  %v865 = vunpack.c.h.b16 %v191
  %v866 = vunpack.c.l.b16 %v192
  %v867 = vunpack.c.h.b16 %v192
  %v868 = vunpack.c.l.b16 %v193
  %v869 = vunpack.c.h.b16 %v193
  %v870 = vunpack.c.l.b16 %v194
  %v871 = vunpack.c.h.b16 %v194
  %v872 = vunpack.c.l.b16 %v195
  %v873 = vunpack.c.h.b16 %v195
  %v874 = vunpack.c.l.b16 %v196
  %v875 = vunpack.c.h.b16 %v196
  %v876 = vunpack.c.l.b16 %v197
  %v877 = vunpack.c.h.b16 %v197
  %v878 = vunpack.c.l.b16 %v198
  %v879 = vunpack.c.h.b16 %v198
  %v880 = vunpack.c.l.b16 %v199
  %v881 = vunpack.c.h.b16 %v199
  %v882 = vunpack.c.l.b16 %v200
  %v883 = vunpack.c.h.b16 %v200
  %v884 = vunpack.c.l.b16 %v201
  %v885 = vunpack.c.h.b16 %v201
  %v886 = vunpack.c.l.b16 %v202
  %v887 = vunpack.c.h.b16 %v202
  %v888 = vunpack.c.l.b16 %v203
  %v889 = vunpack.c.h.b16 %v203
  %v890 = vunpack.c.l.b16 %v204
  %v891 = vunpack.c.h.b16 %v204
  %v892 = vunpack.c.l.b16 %v205
  %v893 = vunpack.c.h.b16 %v205
  %v894 = vunpack.c.l.b16 %v206
  %v895 = vunpack.c.h.b16 %v206
  %v896 = vunpack.c.l.b16 %v207
  %v897 = vunpack.c.h.b16 %v207
  %v898 = vunpack.c.l.b16 %v208
  %v899 = vunpack.c.h.b16 %v208
  %v900 = vunpack.c.l.b16 %v209
  %v901 = vunpack.c.h.b16 %v209
  %v902 = vunpack.c.l.b16 %v210
  %v903 = vunpack.c.h.b16 %v210
  %v904 = vunpack.c.l.b16 %v211
  %v905 = vunpack.c.h.b16 %v211
  %v906 = vunpack.c.l.b16 %v212
  %v907 = vunpack.c.h.b16 %v212
  %v908 = vunpack.c.l.b16 %v213
  %v909 = vunpack.c.h.b16 %v213
  %v910 = vunpack.c.l.b16 %v214
  %v911 = vunpack.c.h.b16 %v214
  %v912 = vunpack.c.l.b16 %v215
  %v913 = vunpack.c.h.b16 %v215
  %v914 = vunpack.c.l.b16 %v216
  %v915 = vunpack.c.h.b16 %v216
  %v916 = vunpack.c.l.b16 %v217
  %v917 = vunpack.c.h.b16 %v217
  %v918 = vunpack.c.l.b16 %v218
  %v919 = vunpack.c.h.b16 %v218
  %v920 = vunpack.c.l.b16 %v219
  %v921 = vunpack.c.h.b16 %v219
  %v922 = vunpack.c.l.b16 %v220
  %v923 = vunpack.c.h.b16 %v220
  %v924 = vunpack.c.l.b16 %v221
  %v925 = vunpack.c.h.b16 %v221
  %v926 = vunpack.c.l.b16 %v222
  %v927 = vunpack.c.h.b16 %v222
  %v928 = vunpack.c.l.b16 %v223
  %v929 = vunpack.c.h.b16 %v223
  %v930 = vunpack.c.l.b16 %v224
  %v931 = vunpack.c.h.b16 %v224
  %v932 = vunpack.c.l.b16 %v225
  %v933 = vunpack.c.h.b16 %v225
  %v934 = vunpack.c.l.b16 %v226
  %v935 = vunpack.c.h.b16 %v226
  %v936 = vunpack.c.l.b16 %v227
  %v937 = vunpack.c.h.b16 %v227
  %v938 = vunpack.c.l.b16 %v228
  %v939 = vunpack.c.h.b16 %v228
  %v940 = vunpack.c.l.b16 %v229
  %v941 = vunpack.c.h.b16 %v229
  %v942 = vunpack.c.l.b16 %v230
  %v943 = vunpack.c.h.b16 %v230
  %v944 = vunpack.c.l.b16 %v231
  %v945 = vunpack.c.h.b16 %v231
  %v946 = vunpack.c.l.b16 %v232
  %v947 = vunpack.c.h.b16 %v232
  %v948 = vunpack.c.l.b16 %v233
  %v949 = vunpack.c.h.b16 %v233
  %v950 = vunpack.c.l.b16 %v234
  %v951 = vunpack.c.h.b16 %v234
  %v952 = vunpack.c.l.b16 %v235
  %v953 = vunpack.c.h.b16 %v235
  %v954 = vunpack.c.l.b16 %v236
  %v955 = vunpack.c.h.b16 %v236
  %v956 = vunpack.c.l.b16 %v237
  %v957 = vunpack.c.h.b16 %v237
  %v958 = vunpack.c.l.b16 %v238
  %v959 = vunpack.c.h.b16 %v238
  %v960 = vunpack.c.l.b16 %v239
  %v961 = vunpack.c.h.b16 %v239
  %v962 = vunpack.c.l.b16 %v240
  %v963 = vunpack.c.h.b16 %v240
  %v964 = vunpack.c.l.b16 %v241
  %v965 = vunpack.c.h.b16 %v241
  %v966 = vunpack.c.l.b16 %v242
  %v967 = vunpack.c.h.b16 %v242
  %v968 = vunpack.c.l.b16 %v243
  %v969 = vunpack.c.h.b16 %v243
  %v970 = vunpack.c.l.b16 %v244
  %v971 = vunpack.c.h.b16 %v244
  %v972 = vunpack.c.l.b16 %v245
  %v973 = vunpack.c.h.b16 %v245
  %v974 = vunpack.c.l.b16 %v246
  %v975 = vunpack.c.h.b16 %v246
  %v976 = vunpack.c.l.b16 %v247
  %v977 = vunpack.c.h.b16 %v247
  %v978 = vunpack.c.l.b16 %v248
  %v979 = vunpack.c.h.b16 %v248
  %v980 = vunpack.c.l.b16 %v249
  %v981 = vunpack.c.h.b16 %v249
  %v982 = vunpack.c.l.b16 %v250
  %v983 = vunpack.c.h.b16 %v250
  %v984 = vunpack.c.l.b16 %v251
  %v985 = vunpack.c.h.b16 %v251
  %v986 = vunpack.c.l.b16 %v252
  %v987 = vunpack.c.h.b16 %v252
  %v988 = vunpack.c.l.b16 %v253
  %v989 = vunpack.c.h.b16 %v253
  %v990 = vunpack.c.l.b16 %v254
  %v991 = vunpack.c.h.b16 %v254
  %v992 = vunpack.c.l.b16 %v255
  %v993 = vunpack.c.h.b16 %v255
  %v994 = vunpack.c.l.b16 %v256
  %v995 = vunpack.c.h.b16 %v256
  %v996 = vunpack.c.l.b16 %v257
  %v997 = vunpack.c.h.b16 %v257
  %v998 = vunpack.c.l.b16 %v258
  %v999 = vunpack.c.h.b16 %v258
  %v1000 = vunpack.c.l.b16 %v259
  %v1001 = vunpack.c.h.b16 %v259
  %v1002 = vunpack.c.l.b16 %v260
  %v1003 = vunpack.c.h.b16 %v260
  %v1004 = vunpack.c.l.b16 %v261
  %v1005 = vunpack.c.h.b16 %v261
  %v1006 = vunpack.c.l.b16 %v262
  %v1007 = vunpack.c.h.b16 %v262
  %v1008 = vunpack.c.l.b16 %v263
  %v1009 = vunpack.c.h.b16 %v263
  %v1010 = vunpack.c.l.b16 %v264
  %v1011 = vunpack.c.h.b16 %v264
  %v1012 = vunpack.c.l.b16 %v265
  %v1013 = vunpack.c.h.b16 %v265
  %v1014 = vunpack.c.l.b16 %v266
  %v1015 = vunpack.c.h.b16 %v266
  %v1016 = vunpack.c.l.b16 %v267
  %v1017 = vunpack.c.h.b16 %v267
  %v1018 = vunpack.c.l.b16 %v268
  %v1019 = vunpack.c.h.b16 %v268
  %v1020 = vunpack.c.l.b16 %v269
  %v1021 = vunpack.c.h.b16 %v269
  %v1022 = vunpack.c.l.b16 %v270
  %v1023 = vunpack.c.h.b16 %v270
  %v1024 = vunpack.c.l.b16 %v271
  %v1025 = vunpack.c.h.b16 %v271
  %v1026 = vpack.c.b16 %v582, %v578
  %v1027 = vpack.c.b16 %v583, %v579
  %v1028 = vpack.c.b16 %v584, %v580
  %v1029 = vpack.c.b16 %v585, %v581
  %v1030 = vpack.c.b16 %v590, %v586
  %v1031 = vpack.c.b16 %v591, %v587
  %v1032 = vpack.c.b16 %v592, %v588
  %v1033 = vpack.c.b16 %v593, %v589
  %v1034 = vpack.c.b16 %v598, %v594
  %v1035 = vpack.c.b16 %v599, %v595
  %v1036 = vpack.c.b16 %v600, %v596
  %v1037 = vpack.c.b16 %v601, %v597
  %v1038 = vpack.c.b16 %v606, %v602
  %v1039 = vpack.c.b16 %v607, %v603
  %v1040 = vpack.c.b16 %v608, %v604
  %v1041 = vpack.c.b16 %v609, %v605
  %v1042 = vpack.c.b16 %v614, %v610
  %v1043 = vpack.c.b16 %v615, %v611
  %v1044 = vpack.c.b16 %v616, %v612
  %v1045 = vpack.c.b16 %v617, %v613
  %v1046 = vpack.c.b16 %v622, %v618
  %v1047 = vpack.c.b16 %v623, %v619
  %v1048 = vpack.c.b16 %v624, %v620
  %v1049 = vpack.c.b16 %v625, %v621
  %v1050 = vpack.c.b16 %v630, %v626
  %v1051 = vpack.c.b16 %v631, %v627
  %v1052 = vpack.c.b16 %v632, %v628
  %v1053 = vpack.c.b16 %v633, %v629
  %v1054 = vpack.c.b16 %v638, %v634
  %v1055 = vpack.c.b16 %v639, %v635
  %v1056 = vpack.c.b16 %v640, %v636
  %v1057 = vpack.c.b16 %v641, %v637
  %v1058 = vpack.c.b16 %v646, %v642
  %v1059 = vpack.c.b16 %v647, %v643
  %v1060 = vpack.c.b16 %v648, %v644
  %v1061 = vpack.c.b16 %v649, %v645
  %v1062 = vpack.c.b16 %v654, %v650
  %v1063 = vpack.c.b16 %v655, %v651
  %v1064 = vpack.c.b16 %v656, %v652
  %v1065 = vpack.c.b16 %v657, %v653
  %v1066 = vpack.c.b16 %v662, %v658
  %v1067 = vpack.c.b16 %v663, %v659
  %v1068 = vpack.c.b16 %v664, %v660
  %v1069 = vpack.c.b16 %v665, %v661
  %v1070 = vpack.c.b16 %v670, %v666
  %v1071 = vpack.c.b16 %v671, %v667
  %v1072 = vpack.c.b16 %v672, %v668
  %v1073 = vpack.c.b16 %v673, %v669
  %v1074 = vpack.c.b16 %v678, %v674
  %v1075 = vpack.c.b16 %v679, %v675
  %v1076 = vpack.c.b16 %v680, %v676
  %v1077 = vpack.c.b16 %v681, %v677
  %v1078 = vpack.c.b16 %v686, %v682
  %v1079 = vpack.c.b16 %v687, %v683
  %v1080 = vpack.c.b16 %v688, %v684
  %v1081 = vpack.c.b16 %v689, %v685
  %v1082 = vpack.c.b16 %v694, %v690
  %v1083 = vpack.c.b16 %v695, %v691
  %v1084 = vpack.c.b16 %v696, %v692
  %v1085 = vpack.c.b16 %v697, %v693
  %v1086 = vpack.c.b16 %v702, %v698
  %v1087 = vpack.c.b16 %v703, %v699
  %v1088 = vpack.c.b16 %v704, %v700
  %v1089 = vpack.c.b16 %v705, %v701
  %v1090 = vpack.c.b16 %v710, %v706
  %v1091 = vpack.c.b16 %v711, %v707
  %v1092 = vpack.c.b16 %v712, %v708
  %v1093 = vpack.c.b16 %v713, %v709
  %v1094 = vpack.c.b16 %v718, %v714
  %v1095 = vpack.c.b16 %v719, %v715
  %v1096 = vpack.c.b16 %v720, %v716
  %v1097 = vpack.c.b16 %v721, %v717
  %v1098 = vpack.c.b16 %v726, %v722
  %v1099 = vpack.c.b16 %v727, %v723
  %v1100 = vpack.c.b16 %v728, %v724
  %v1101 = vpack.c.b16 %v729, %v725
  %v1102 = vpack.c.b16 %v734, %v730
  %v1103 = vpack.c.b16 %v735, %v731
  %v1104 = vpack.c.b16 %v736, %v732
  %v1105 = vpack.c.b16 %v737, %v733
  %v1106 = vpack.c.b16 %v742, %v738
  %v1107 = vpack.c.b16 %v743, %v739
  %v1108 = vpack.c.b16 %v744, %v740
  %v1109 = vpack.c.b16 %v745, %v741
  %v1110 = vpack.c.b16 %v750, %v746
  %v1111 = vpack.c.b16 %v751, %v747
  %v1112 = vpack.c.b16 %v752, %v748
  %v1113 = vpack.c.b16 %v753, %v749
  %v1114 = vpack.c.b16 %v758, %v754
  %v1115 = vpack.c.b16 %v759, %v755
  %v1116 = vpack.c.b16 %v760, %v756
  %v1117 = vpack.c.b16 %v761, %v757
  %v1118 = vpack.c.b16 %v766, %v762
  %v1119 = vpack.c.b16 %v767, %v763
  %v1120 = vpack.c.b16 %v768, %v764
  %v1121 = vpack.c.b16 %v769, %v765
  %v1122 = vpack.c.b16 %v774, %v770
  %v1123 = vpack.c.b16 %v775, %v771
  %v1124 = vpack.c.b16 %v776, %v772
  %v1125 = vpack.c.b16 %v777, %v773
  %v1126 = vpack.c.b16 %v782, %v778
  %v1127 = vpack.c.b16 %v783, %v779
  %v1128 = vpack.c.b16 %v784, %v780
  %v1129 = vpack.c.b16 %v785, %v781
  %v1130 = vpack.c.b16 %v790, %v786
  %v1131 = vpack.c.b16 %v791, %v787
  %v1132 = vpack.c.b16 %v792, %v788
  %v1133 = vpack.c.b16 %v793, %v789
  %v1134 = vpack.c.b16 %v798, %v794
  %v1135 = vpack.c.b16 %v799, %v795
  %v1136 = vpack.c.b16 %v800, %v796
  %v1137 = vpack.c.b16 %v801, %v797
  %v1138 = vpack.c.b16 %v806, %v802
  %v1139 = vpack.c.b16 %v807, %v803
  %v1140 = vpack.c.b16 %v808, %v804
  %v1141 = vpack.c.b16 %v809, %v805
  %v1142 = vpack.c.b16 %v814, %v810
  %v1143 = vpack.c.b16 %v815, %v811
  %v1144 = vpack.c.b16 %v816, %v812
  %v1145 = vpack.c.b16 %v817, %v813
  %v1146 = vpack.c.b16 %v822, %v818
  %v1147 = vpack.c.b16 %v823, %v819
  %v1148 = vpack.c.b16 %v824, %v820
  %v1149 = vpack.c.b16 %v825, %v821
  %v1150 = vpack.c.b16 %v830, %v826
  %v1151 = vpack.c.b16 %v831, %v827
  %v1152 = vpack.c.b16 %v832, %v828
  %v1153 = vpack.c.b16 %v833, %v829
  %v1154 = vpack.c.b16 %v838, %v834
  %v1155 = vpack.c.b16 %v839, %v835
  %v1156 = vpack.c.b16 %v840, %v836
  %v1157 = vpack.c.b16 %v841, %v837
  %v1158 = vpack.c.b16 %v846, %v842
  %v1159 = vpack.c.b16 %v847, %v843
  %v1160 = vpack.c.b16 %v848, %v844
  %v1161 = vpack.c.b16 %v849, %v845
  %v1162 = vpack.c.b16 %v854, %v850
  %v1163 = vpack.c.b16 %v855, %v851
  %v1164 = vpack.c.b16 %v856, %v852
  %v1165 = vpack.c.b16 %v857, %v853
  %v1166 = vpack.c.b16 %v862, %v858
  %v1167 = vpack.c.b16 %v863, %v859
  %v1168 = vpack.c.b16 %v864, %v860
  %v1169 = vpack.c.b16 %v865, %v861
  %v1170 = vpack.c.b16 %v870, %v866
  %v1171 = vpack.c.b16 %v871, %v867
  %v1172 = vpack.c.b16 %v872, %v868
  %v1173 = vpack.c.b16 %v873, %v869
  %v1174 = vpack.c.b16 %v878, %v874
  %v1175 = vpack.c.b16 %v879, %v875
  %v1176 = vpack.c.b16 %v880, %v876
  %v1177 = vpack.c.b16 %v881, %v877
  %v1178 = vpack.c.b16 %v886, %v882
  %v1179 = vpack.c.b16 %v887, %v883
  %v1180 = vpack.c.b16 %v888, %v884
  %v1181 = vpack.c.b16 %v889, %v885
  %v1182 = vpack.c.b16 %v894, %v890
  %v1183 = vpack.c.b16 %v895, %v891
  %v1184 = vpack.c.b16 %v896, %v892
  %v1185 = vpack.c.b16 %v897, %v893
  %v1186 = vpack.c.b16 %v902, %v898
  %v1187 = vpack.c.b16 %v903, %v899
  %v1188 = vpack.c.b16 %v904, %v900
  %v1189 = vpack.c.b16 %v905, %v901
  %v1190 = vpack.c.b16 %v910, %v906
  %v1191 = vpack.c.b16 %v911, %v907
  %v1192 = vpack.c.b16 %v912, %v908
  %v1193 = vpack.c.b16 %v913, %v909
  %v1194 = vpack.c.b16 %v918, %v914
  %v1195 = vpack.c.b16 %v919, %v915
  %v1196 = vpack.c.b16 %v920, %v916
  %v1197 = vpack.c.b16 %v921, %v917
  %v1198 = vpack.c.b16 %v926, %v922
  %v1199 = vpack.c.b16 %v927, %v923
  %v1200 = vpack.c.b16 %v928, %v924
  %v1201 = vpack.c.b16 %v929, %v925
  %v1202 = vpack.c.b16 %v934, %v930
  %v1203 = vpack.c.b16 %v935, %v931
  %v1204 = vpack.c.b16 %v936, %v932
  %v1205 = vpack.c.b16 %v937, %v933
  %v1206 = vpack.c.b16 %v942, %v938
  %v1207 = vpack.c.b16 %v943, %v939
  %v1208 = vpack.c.b16 %v944, %v940
  %v1209 = vpack.c.b16 %v945, %v941
  %v1210 = vpack.c.b16 %v950, %v946
  %v1211 = vpack.c.b16 %v951, %v947
  %v1212 = vpack.c.b16 %v952, %v948
  %v1213 = vpack.c.b16 %v953, %v949
  %v1214 = vpack.c.b16 %v958, %v954
  %v1215 = vpack.c.b16 %v959, %v955
  %v1216 = vpack.c.b16 %v960, %v956
  %v1217 = vpack.c.b16 %v961, %v957
  %v1218 = vpack.c.b16 %v966, %v962
  %v1219 = vpack.c.b16 %v967, %v963
  %v1220 = vpack.c.b16 %v968, %v964
  %v1221 = vpack.c.b16 %v969, %v965
  %v1222 = vpack.c.b16 %v974, %v970
  %v1223 = vpack.c.b16 %v975, %v971
  %v1224 = vpack.c.b16 %v976, %v972
  %v1225 = vpack.c.b16 %v977, %v973
  %v1226 = vpack.c.b16 %v982, %v978
  %v1227 = vpack.c.b16 %v983, %v979
  %v1228 = vpack.c.b16 %v984, %v980
  %v1229 = vpack.c.b16 %v985, %v981
  %v1230 = vpack.c.b16 %v990, %v986
  %v1231 = vpack.c.b16 %v991, %v987
  %v1232 = vpack.c.b16 %v992, %v988
  %v1233 = vpack.c.b16 %v993, %v989
  %v1234 = vpack.c.b16 %v998, %v994
  %v1235 = vpack.c.b16 %v999, %v995
  %v1236 = vpack.c.b16 %v1000, %v996
  %v1237 = vpack.c.b16 %v1001, %v997
  %v1238 = vpack.c.b16 %v1006, %v1002
  %v1239 = vpack.c.b16 %v1007, %v1003
  %v1240 = vpack.c.b16 %v1008, %v1004
  %v1241 = vpack.c.b16 %v1009, %v1005
  %v1242 = vpack.c.b16 %v1014, %v1010
  %v1243 = vpack.c.b16 %v1015, %v1011
  %v1244 = vpack.c.b16 %v1016, %v1012
  %v1245 = vpack.c.b16 %v1017, %v1013
  %v1246 = vpack.c.b16 %v1022, %v1018
  %v1247 = vpack.c.b16 %v1023, %v1019
  %v1248 = vpack.c.b16 %v1024, %v1020
  %v1249 = vpack.c.b16 %v1025, %v1021
  %1474 = vmatpush.bf16.msra.mxu0 %v1054
  %1475 = vmatpush.bf16.msra.mxu0 %v1050
  %1476 = vmatpush.bf16.msra.mxu0 %v1046
  %1477 = vmatpush.bf16.msra.mxu0 %v1042
  %1478 = vmatpush.bf16.msra.mxu0 %v1038
  %1479 = vmatpush.bf16.msra.mxu0 %v1034
  %1480 = vmatpush.bf16.msra.mxu0 %v1030
  %1481 = vmatpush.bf16.msra.mxu0 %v1026
  %1482 = vmatmul.bf16.gmra.mxu0 %v326
  %v1483 = vpop.f32.mrf.mxu0
  %v1484 = vadd.f32 %v274, %v1483
  %v1485 = vpop.f32.mrf.mxu0
  %v1486 = vadd.f32 %v274, %v1485
  %1487 = vmatmul.bf16.gmra.mxu0 %v333
  %v1488 = vpop.f32.mrf.mxu0
  %v1489 = vadd.f32 %v274, %v1488
  %v1490 = vpop.f32.mrf.mxu0
  %v1491 = vadd.f32 %v274, %v1490
  %1492 = vdwg.mxu0
  %1493 = vmatpush.bf16.msra.mxu0 %v1086
  %1494 = vmatpush.bf16.msra.mxu0 %v1082
  %1495 = vmatpush.bf16.msra.mxu0 %v1078
  %1496 = vmatpush.bf16.msra.mxu0 %v1074
  %1497 = vmatpush.bf16.msra.mxu0 %v1070
  %1498 = vmatpush.bf16.msra.mxu0 %v1066
  %1499 = vmatpush.bf16.msra.mxu0 %v1062
  %1500 = vmatpush.bf16.msra.mxu0 %v1058
  %1501 = vmatmul.bf16.gmra.mxu0 %v327
  %v1502 = vpop.f32.mrf.mxu0
  %v1503 = vadd.f32 %v1484, %v1502
  %v1504 = vpop.f32.mrf.mxu0
  %v1505 = vadd.f32 %v1486, %v1504
  %1506 = vmatmul.bf16.gmra.mxu0 %v334
  %v1507 = vpop.f32.mrf.mxu0
  %v1508 = vadd.f32 %v1489, %v1507
  %v1509 = vpop.f32.mrf.mxu0
  %v1510 = vadd.f32 %v1491, %v1509
  %1511 = vdwg.mxu0
  %1512 = vmatpush.bf16.msra.mxu0 %v1118
  %1513 = vmatpush.bf16.msra.mxu0 %v1114
  %1514 = vmatpush.bf16.msra.mxu0 %v1110
  %1515 = vmatpush.bf16.msra.mxu0 %v1106
  %1516 = vmatpush.bf16.msra.mxu0 %v1102
  %1517 = vmatpush.bf16.msra.mxu0 %v1098
  %1518 = vmatpush.bf16.msra.mxu0 %v1094
  %1519 = vmatpush.bf16.msra.mxu0 %v1090
  %1520 = vmatmul.bf16.gmra.mxu0 %v328
  %v1521 = vpop.f32.mrf.mxu0
  %v1522 = vadd.f32 %v1503, %v1521
  %v1523 = vpop.f32.mrf.mxu0
  %v1524 = vadd.f32 %v1505, %v1523
  %1525 = vmatmul.bf16.gmra.mxu0 %v335
  %v1526 = vpop.f32.mrf.mxu0
  %v1527 = vadd.f32 %v1508, %v1526
  %v1528 = vpop.f32.mrf.mxu0
  %v1529 = vadd.f32 %v1510, %v1528
  %1530 = vdwg.mxu0
  %1531 = vmatpush.bf16.msra.mxu0 %v1150
  %1532 = vmatpush.bf16.msra.mxu0 %v1146
  %1533 = vmatpush.bf16.msra.mxu0 %v1142
  %1534 = vmatpush.bf16.msra.mxu0 %v1138
  %1535 = vmatpush.bf16.msra.mxu0 %v1134
  %1536 = vmatpush.bf16.msra.mxu0 %v1130
  %1537 = vmatpush.bf16.msra.mxu0 %v1126
  %1538 = vmatpush.bf16.msra.mxu0 %v1122
  %1539 = vmatmul.bf16.gmra.mxu0 %v329
  %v1540 = vpop.f32.mrf.mxu0
  %v1541 = vadd.f32 %v1522, %v1540
  %v1542 = vpop.f32.mrf.mxu0
  %v1543 = vadd.f32 %v1524, %v1542
  %1544 = vmatmul.bf16.gmra.mxu0 %v336
  %v1545 = vpop.f32.mrf.mxu0
  %v1546 = vadd.f32 %v1527, %v1545
  %v1547 = vpop.f32.mrf.mxu0
  %v1548 = vadd.f32 %v1529, %v1547
  %1549 = vdwg.mxu0
  %1550 = vmatpush.bf16.msra.mxu0 %v1182
  %1551 = vmatpush.bf16.msra.mxu0 %v1178
  %1552 = vmatpush.bf16.msra.mxu0 %v1174
  %1553 = vmatpush.bf16.msra.mxu0 %v1170
  %1554 = vmatpush.bf16.msra.mxu0 %v1166
  %1555 = vmatpush.bf16.msra.mxu0 %v1162
  %1556 = vmatpush.bf16.msra.mxu0 %v1158
  %1557 = vmatpush.bf16.msra.mxu0 %v1154
  %1558 = vmatmul.bf16.gmra.mxu0 %v330
  %v1559 = vpop.f32.mrf.mxu0
  %v1560 = vadd.f32 %v1541, %v1559
  %v1561 = vpop.f32.mrf.mxu0
  %v1562 = vadd.f32 %v1543, %v1561
  %1563 = vmatmul.bf16.gmra.mxu0 %v337
  %v1564 = vpop.f32.mrf.mxu0
  %v1565 = vadd.f32 %v1546, %v1564
  %v1566 = vpop.f32.mrf.mxu0
  %v1567 = vadd.f32 %v1548, %v1566
  %1568 = vdwg.mxu0
  %1569 = vmatpush.bf16.msra.mxu0 %v1214
  %1570 = vmatpush.bf16.msra.mxu0 %v1210
  %1571 = vmatpush.bf16.msra.mxu0 %v1206
  %1572 = vmatpush.bf16.msra.mxu0 %v1202
  %1573 = vmatpush.bf16.msra.mxu0 %v1198
  %1574 = vmatpush.bf16.msra.mxu0 %v1194
  %1575 = vmatpush.bf16.msra.mxu0 %v1190
  %1576 = vmatpush.bf16.msra.mxu0 %v1186
  %1577 = vmatmul.bf16.gmra.mxu0 %v331
  %v1578 = vpop.f32.mrf.mxu0
  %v1579 = vadd.f32 %v1560, %v1578
  %v1580 = vpop.f32.mrf.mxu0
  %v1581 = vadd.f32 %v1562, %v1580
  %1582 = vmatmul.bf16.gmra.mxu0 %v338
  %v1583 = vpop.f32.mrf.mxu0
  %v1584 = vadd.f32 %v1565, %v1583
  %v1585 = vpop.f32.mrf.mxu0
  %v1586 = vadd.f32 %v1567, %v1585
  %1587 = vdwg.mxu0
  %1588 = vmatpush.bf16.msra.mxu0 %v1246
  %1589 = vmatpush.bf16.msra.mxu0 %v1242
  %1590 = vmatpush.bf16.msra.mxu0 %v1238
  %1591 = vmatpush.bf16.msra.mxu0 %v1234
  %1592 = vmatpush.bf16.msra.mxu0 %v1230
  %1593 = vmatpush.bf16.msra.mxu0 %v1226
  %1594 = vmatpush.bf16.msra.mxu0 %v1222
  %1595 = vmatpush.bf16.msra.mxu0 %v1218
  %1596 = vmatmul.bf16.gmra.mxu0 %v332
  %v1597 = vpop.f32.mrf.mxu0
  %v1598 = vadd.f32 %v1579, %v1597
  %v1599 = vpop.f32.mrf.mxu0
  %v1600 = vadd.f32 %v1581, %v1599
  %1601 = vmatmul.bf16.gmra.mxu0 %v339
  %v1602 = vpop.f32.mrf.mxu0
  %v1603 = vadd.f32 %v1584, %v1602
  %v1604 = vpop.f32.mrf.mxu0
  %v1605 = vadd.f32 %v1586, %v1604
  %1606 = vdwg.mxu0
  %1607 = vmatpush.bf16.msra.mxu0 %v1055
  %1608 = vmatpush.bf16.msra.mxu0 %v1051
  %1609 = vmatpush.bf16.msra.mxu0 %v1047
  %1610 = vmatpush.bf16.msra.mxu0 %v1043
  %1611 = vmatpush.bf16.msra.mxu0 %v1039
  %1612 = vmatpush.bf16.msra.mxu0 %v1035
  %1613 = vmatpush.bf16.msra.mxu0 %v1031
  %1614 = vmatpush.bf16.msra.mxu0 %v1027
  %1615 = vmatmul.bf16.gmra.mxu0 %v326
  %v1616 = vpop.f32.mrf.mxu0
  %v1617 = vadd.f32 %v275, %v1616
  %v1618 = vpop.f32.mrf.mxu0
  %v1619 = vadd.f32 %v275, %v1618
  %1620 = vmatmul.bf16.gmra.mxu0 %v333
  %v1621 = vpop.f32.mrf.mxu0
  %v1622 = vadd.f32 %v275, %v1621
  %v1623 = vpop.f32.mrf.mxu0
  %v1624 = vadd.f32 %v275, %v1623
  %1625 = vdwg.mxu0
  %1626 = vmatpush.bf16.msra.mxu0 %v1087
  %1627 = vmatpush.bf16.msra.mxu0 %v1083
  %1628 = vmatpush.bf16.msra.mxu0 %v1079
  %1629 = vmatpush.bf16.msra.mxu0 %v1075
  %1630 = vmatpush.bf16.msra.mxu0 %v1071
  %1631 = vmatpush.bf16.msra.mxu0 %v1067
  %1632 = vmatpush.bf16.msra.mxu0 %v1063
  %1633 = vmatpush.bf16.msra.mxu0 %v1059
  %1634 = vmatmul.bf16.gmra.mxu0 %v327
  %v1635 = vpop.f32.mrf.mxu0
  %v1636 = vadd.f32 %v1617, %v1635
  %v1637 = vpop.f32.mrf.mxu0
  %v1638 = vadd.f32 %v1619, %v1637
  %1639 = vmatmul.bf16.gmra.mxu0 %v334
  %v1640 = vpop.f32.mrf.mxu0
  %v1641 = vadd.f32 %v1622, %v1640
  %v1642 = vpop.f32.mrf.mxu0
  %v1643 = vadd.f32 %v1624, %v1642
  %1644 = vdwg.mxu0
  %1645 = vmatpush.bf16.msra.mxu0 %v1119
  %1646 = vmatpush.bf16.msra.mxu0 %v1115
  %1647 = vmatpush.bf16.msra.mxu0 %v1111
  %1648 = vmatpush.bf16.msra.mxu0 %v1107
  %1649 = vmatpush.bf16.msra.mxu0 %v1103
  %1650 = vmatpush.bf16.msra.mxu0 %v1099
  %1651 = vmatpush.bf16.msra.mxu0 %v1095
  %1652 = vmatpush.bf16.msra.mxu0 %v1091
  %1653 = vmatmul.bf16.gmra.mxu0 %v328
  %v1654 = vpop.f32.mrf.mxu0
  %v1655 = vadd.f32 %v1636, %v1654
  %v1656 = vpop.f32.mrf.mxu0
  %v1657 = vadd.f32 %v1638, %v1656
  %1658 = vmatmul.bf16.gmra.mxu0 %v335
  %v1659 = vpop.f32.mrf.mxu0
  %v1660 = vadd.f32 %v1641, %v1659
  %v1661 = vpop.f32.mrf.mxu0
  %v1662 = vadd.f32 %v1643, %v1661
  %1663 = vdwg.mxu0
  %1664 = vmatpush.bf16.msra.mxu0 %v1151
  %1665 = vmatpush.bf16.msra.mxu0 %v1147
  %1666 = vmatpush.bf16.msra.mxu0 %v1143
  %1667 = vmatpush.bf16.msra.mxu0 %v1139
  %1668 = vmatpush.bf16.msra.mxu0 %v1135
  %1669 = vmatpush.bf16.msra.mxu0 %v1131
  %1670 = vmatpush.bf16.msra.mxu0 %v1127
  %1671 = vmatpush.bf16.msra.mxu0 %v1123
  %1672 = vmatmul.bf16.gmra.mxu0 %v329
  %v1673 = vpop.f32.mrf.mxu0
  %v1674 = vadd.f32 %v1655, %v1673
  %v1675 = vpop.f32.mrf.mxu0
  %v1676 = vadd.f32 %v1657, %v1675
  %1677 = vmatmul.bf16.gmra.mxu0 %v336
  %v1678 = vpop.f32.mrf.mxu0
  %v1679 = vadd.f32 %v1660, %v1678
  %v1680 = vpop.f32.mrf.mxu0
  %v1681 = vadd.f32 %v1662, %v1680
  %1682 = vdwg.mxu0
  %1683 = vmatpush.bf16.msra.mxu0 %v1183
  %1684 = vmatpush.bf16.msra.mxu0 %v1179
  %1685 = vmatpush.bf16.msra.mxu0 %v1175
  %1686 = vmatpush.bf16.msra.mxu0 %v1171
  %1687 = vmatpush.bf16.msra.mxu0 %v1167
  %1688 = vmatpush.bf16.msra.mxu0 %v1163
  %1689 = vmatpush.bf16.msra.mxu0 %v1159
  %1690 = vmatpush.bf16.msra.mxu0 %v1155
  %1691 = vmatmul.bf16.gmra.mxu0 %v330
  %v1692 = vpop.f32.mrf.mxu0
  %v1693 = vadd.f32 %v1674, %v1692
  %v1694 = vpop.f32.mrf.mxu0
  %v1695 = vadd.f32 %v1676, %v1694
  %1696 = vmatmul.bf16.gmra.mxu0 %v337
  %v1697 = vpop.f32.mrf.mxu0
  %v1698 = vadd.f32 %v1679, %v1697
  %v1699 = vpop.f32.mrf.mxu0
  %v1700 = vadd.f32 %v1681, %v1699
  %1701 = vdwg.mxu0
  %1702 = vmatpush.bf16.msra.mxu0 %v1215
  %1703 = vmatpush.bf16.msra.mxu0 %v1211
  %1704 = vmatpush.bf16.msra.mxu0 %v1207
  %1705 = vmatpush.bf16.msra.mxu0 %v1203
  %1706 = vmatpush.bf16.msra.mxu0 %v1199
  %1707 = vmatpush.bf16.msra.mxu0 %v1195
  %1708 = vmatpush.bf16.msra.mxu0 %v1191
  %1709 = vmatpush.bf16.msra.mxu0 %v1187
  %1710 = vmatmul.bf16.gmra.mxu0 %v331
  %v1711 = vpop.f32.mrf.mxu0
  %v1712 = vadd.f32 %v1693, %v1711
  %v1713 = vpop.f32.mrf.mxu0
  %v1714 = vadd.f32 %v1695, %v1713
  %1715 = vmatmul.bf16.gmra.mxu0 %v338
  %v1716 = vpop.f32.mrf.mxu0
  %v1717 = vadd.f32 %v1698, %v1716
  %v1718 = vpop.f32.mrf.mxu0
  %v1719 = vadd.f32 %v1700, %v1718
  %1720 = vdwg.mxu0
  %1721 = vmatpush.bf16.msra.mxu0 %v1247
  %1722 = vmatpush.bf16.msra.mxu0 %v1243
  %1723 = vmatpush.bf16.msra.mxu0 %v1239
  %1724 = vmatpush.bf16.msra.mxu0 %v1235
  %1725 = vmatpush.bf16.msra.mxu0 %v1231
  %1726 = vmatpush.bf16.msra.mxu0 %v1227
  %1727 = vmatpush.bf16.msra.mxu0 %v1223
  %1728 = vmatpush.bf16.msra.mxu0 %v1219
  %1729 = vmatmul.bf16.gmra.mxu0 %v332
  %v1730 = vpop.f32.mrf.mxu0
  %v1731 = vadd.f32 %v1712, %v1730
  %v1732 = vpop.f32.mrf.mxu0
  %v1733 = vadd.f32 %v1714, %v1732
  %1734 = vmatmul.bf16.gmra.mxu0 %v339
  %v1735 = vpop.f32.mrf.mxu0
  %v1736 = vadd.f32 %v1717, %v1735
  %v1737 = vpop.f32.mrf.mxu0
  %v1738 = vadd.f32 %v1719, %v1737
  %1739 = vdwg.mxu0
  %1740 = vmatpush.bf16.msra.mxu0 %v1056
  %1741 = vmatpush.bf16.msra.mxu0 %v1052
  %1742 = vmatpush.bf16.msra.mxu0 %v1048
  %1743 = vmatpush.bf16.msra.mxu0 %v1044
  %1744 = vmatpush.bf16.msra.mxu0 %v1040
  %1745 = vmatpush.bf16.msra.mxu0 %v1036
  %1746 = vmatpush.bf16.msra.mxu0 %v1032
  %1747 = vmatpush.bf16.msra.mxu0 %v1028
  %1748 = vmatmul.bf16.gmra.mxu0 %v326
  %v1749 = vpop.f32.mrf.mxu0
  %v1750 = vadd.f32 %v276, %v1749
  %v1751 = vpop.f32.mrf.mxu0
  %v1752 = vadd.f32 %v276, %v1751
  %1753 = vmatmul.bf16.gmra.mxu0 %v333
  %v1754 = vpop.f32.mrf.mxu0
  %v1755 = vadd.f32 %v276, %v1754
  %v1756 = vpop.f32.mrf.mxu0
  %v1757 = vadd.f32 %v276, %v1756
  %1758 = vdwg.mxu0
  %1759 = vmatpush.bf16.msra.mxu0 %v1088
  %1760 = vmatpush.bf16.msra.mxu0 %v1084
  %1761 = vmatpush.bf16.msra.mxu0 %v1080
  %1762 = vmatpush.bf16.msra.mxu0 %v1076
  %1763 = vmatpush.bf16.msra.mxu0 %v1072
  %1764 = vmatpush.bf16.msra.mxu0 %v1068
  %1765 = vmatpush.bf16.msra.mxu0 %v1064
  %1766 = vmatpush.bf16.msra.mxu0 %v1060
  %1767 = vmatmul.bf16.gmra.mxu0 %v327
  %v1768 = vpop.f32.mrf.mxu0
  %v1769 = vadd.f32 %v1750, %v1768
  %v1770 = vpop.f32.mrf.mxu0
  %v1771 = vadd.f32 %v1752, %v1770
  %1772 = vmatmul.bf16.gmra.mxu0 %v334
  %v1773 = vpop.f32.mrf.mxu0
  %v1774 = vadd.f32 %v1755, %v1773
  %v1775 = vpop.f32.mrf.mxu0
  %v1776 = vadd.f32 %v1757, %v1775
  %1777 = vdwg.mxu0
  %1778 = vmatpush.bf16.msra.mxu0 %v1120
  %1779 = vmatpush.bf16.msra.mxu0 %v1116
  %1780 = vmatpush.bf16.msra.mxu0 %v1112
  %1781 = vmatpush.bf16.msra.mxu0 %v1108
  %1782 = vmatpush.bf16.msra.mxu0 %v1104
  %1783 = vmatpush.bf16.msra.mxu0 %v1100
  %1784 = vmatpush.bf16.msra.mxu0 %v1096
  %1785 = vmatpush.bf16.msra.mxu0 %v1092
  %1786 = vmatmul.bf16.gmra.mxu0 %v328
  %v1787 = vpop.f32.mrf.mxu0
  %v1788 = vadd.f32 %v1769, %v1787
  %v1789 = vpop.f32.mrf.mxu0
  %v1790 = vadd.f32 %v1771, %v1789
  %1791 = vmatmul.bf16.gmra.mxu0 %v335
  %v1792 = vpop.f32.mrf.mxu0
  %v1793 = vadd.f32 %v1774, %v1792
  %v1794 = vpop.f32.mrf.mxu0
  %v1795 = vadd.f32 %v1776, %v1794
  %1796 = vdwg.mxu0
  %1797 = vmatpush.bf16.msra.mxu0 %v1152
  %1798 = vmatpush.bf16.msra.mxu0 %v1148
  %1799 = vmatpush.bf16.msra.mxu0 %v1144
  %1800 = vmatpush.bf16.msra.mxu0 %v1140
  %1801 = vmatpush.bf16.msra.mxu0 %v1136
  %1802 = vmatpush.bf16.msra.mxu0 %v1132
  %1803 = vmatpush.bf16.msra.mxu0 %v1128
  %1804 = vmatpush.bf16.msra.mxu0 %v1124
  %1805 = vmatmul.bf16.gmra.mxu0 %v329
  %v1806 = vpop.f32.mrf.mxu0
  %v1807 = vadd.f32 %v1788, %v1806
  %v1808 = vpop.f32.mrf.mxu0
  %v1809 = vadd.f32 %v1790, %v1808
  %1810 = vmatmul.bf16.gmra.mxu0 %v336
  %v1811 = vpop.f32.mrf.mxu0
  %v1812 = vadd.f32 %v1793, %v1811
  %v1813 = vpop.f32.mrf.mxu0
  %v1814 = vadd.f32 %v1795, %v1813
  %1815 = vdwg.mxu0
  %1816 = vmatpush.bf16.msra.mxu0 %v1184
  %1817 = vmatpush.bf16.msra.mxu0 %v1180
  %1818 = vmatpush.bf16.msra.mxu0 %v1176
  %1819 = vmatpush.bf16.msra.mxu0 %v1172
  %1820 = vmatpush.bf16.msra.mxu0 %v1168
  %1821 = vmatpush.bf16.msra.mxu0 %v1164
  %1822 = vmatpush.bf16.msra.mxu0 %v1160
  %1823 = vmatpush.bf16.msra.mxu0 %v1156
  %1824 = vmatmul.bf16.gmra.mxu0 %v330
  %v1825 = vpop.f32.mrf.mxu0
  %v1826 = vadd.f32 %v1807, %v1825
  %v1827 = vpop.f32.mrf.mxu0
  %v1828 = vadd.f32 %v1809, %v1827
  %1829 = vmatmul.bf16.gmra.mxu0 %v337
  %v1830 = vpop.f32.mrf.mxu0
  %v1831 = vadd.f32 %v1812, %v1830
  %v1832 = vpop.f32.mrf.mxu0
  %v1833 = vadd.f32 %v1814, %v1832
  %1834 = vdwg.mxu0
  %1835 = vmatpush.bf16.msra.mxu0 %v1216
  %1836 = vmatpush.bf16.msra.mxu0 %v1212
  %1837 = vmatpush.bf16.msra.mxu0 %v1208
  %1838 = vmatpush.bf16.msra.mxu0 %v1204
  %1839 = vmatpush.bf16.msra.mxu0 %v1200
  %1840 = vmatpush.bf16.msra.mxu0 %v1196
  %1841 = vmatpush.bf16.msra.mxu0 %v1192
  %1842 = vmatpush.bf16.msra.mxu0 %v1188
  %1843 = vmatmul.bf16.gmra.mxu0 %v331
  %v1844 = vpop.f32.mrf.mxu0
  %v1845 = vadd.f32 %v1826, %v1844
  %v1846 = vpop.f32.mrf.mxu0
  %v1847 = vadd.f32 %v1828, %v1846
  %1848 = vmatmul.bf16.gmra.mxu0 %v338
  %v1849 = vpop.f32.mrf.mxu0
  %v1850 = vadd.f32 %v1831, %v1849
  %v1851 = vpop.f32.mrf.mxu0
  %v1852 = vadd.f32 %v1833, %v1851
  %1853 = vdwg.mxu0
  %1854 = vmatpush.bf16.msra.mxu0 %v1248
  %1855 = vmatpush.bf16.msra.mxu0 %v1244
  %1856 = vmatpush.bf16.msra.mxu0 %v1240
  %1857 = vmatpush.bf16.msra.mxu0 %v1236
  %1858 = vmatpush.bf16.msra.mxu0 %v1232
  %1859 = vmatpush.bf16.msra.mxu0 %v1228
  %1860 = vmatpush.bf16.msra.mxu0 %v1224
  %1861 = vmatpush.bf16.msra.mxu0 %v1220
  %1862 = vmatmul.bf16.gmra.mxu0 %v332
  %v1863 = vpop.f32.mrf.mxu0
  %v1864 = vadd.f32 %v1845, %v1863
  %v1865 = vpop.f32.mrf.mxu0
  %v1866 = vadd.f32 %v1847, %v1865
  %1867 = vmatmul.bf16.gmra.mxu0 %v339
  %v1868 = vpop.f32.mrf.mxu0
  %v1869 = vadd.f32 %v1850, %v1868
  %v1870 = vpop.f32.mrf.mxu0
  %v1871 = vadd.f32 %v1852, %v1870
  %1872 = vdwg.mxu0
  %1873 = vmatpush.bf16.msra.mxu0 %v1057
  %1874 = vmatpush.bf16.msra.mxu0 %v1053
  %1875 = vmatpush.bf16.msra.mxu0 %v1049
  %1876 = vmatpush.bf16.msra.mxu0 %v1045
  %1877 = vmatpush.bf16.msra.mxu0 %v1041
  %1878 = vmatpush.bf16.msra.mxu0 %v1037
  %1879 = vmatpush.bf16.msra.mxu0 %v1033
  %1880 = vmatpush.bf16.msra.mxu0 %v1029
  %1881 = vmatmul.bf16.gmra.mxu0 %v326
  %v1882 = vpop.f32.mrf.mxu0
  %v1883 = vadd.f32 %v277, %v1882
  %v1884 = vpop.f32.mrf.mxu0
  %v1885 = vadd.f32 %v277, %v1884
  %1886 = vmatmul.bf16.gmra.mxu0 %v333
  %v1887 = vpop.f32.mrf.mxu0
  %v1888 = vadd.f32 %v277, %v1887
  %v1889 = vpop.f32.mrf.mxu0
  %v1890 = vadd.f32 %v277, %v1889
  %1891 = vdwg.mxu0
  %1892 = vmatpush.bf16.msra.mxu0 %v1089
  %1893 = vmatpush.bf16.msra.mxu0 %v1085
  %1894 = vmatpush.bf16.msra.mxu0 %v1081
  %1895 = vmatpush.bf16.msra.mxu0 %v1077
  %1896 = vmatpush.bf16.msra.mxu0 %v1073
  %1897 = vmatpush.bf16.msra.mxu0 %v1069
  %1898 = vmatpush.bf16.msra.mxu0 %v1065
  %1899 = vmatpush.bf16.msra.mxu0 %v1061
  %1900 = vmatmul.bf16.gmra.mxu0 %v327
  %v1901 = vpop.f32.mrf.mxu0
  %v1902 = vadd.f32 %v1883, %v1901
  %v1903 = vpop.f32.mrf.mxu0
  %v1904 = vadd.f32 %v1885, %v1903
  %1905 = vmatmul.bf16.gmra.mxu0 %v334
  %v1906 = vpop.f32.mrf.mxu0
  %v1907 = vadd.f32 %v1888, %v1906
  %v1908 = vpop.f32.mrf.mxu0
  %v1909 = vadd.f32 %v1890, %v1908
  %1910 = vdwg.mxu0
  %1911 = vmatpush.bf16.msra.mxu0 %v1121
  %1912 = vmatpush.bf16.msra.mxu0 %v1117
  %1913 = vmatpush.bf16.msra.mxu0 %v1113
  %1914 = vmatpush.bf16.msra.mxu0 %v1109
  %1915 = vmatpush.bf16.msra.mxu0 %v1105
  %1916 = vmatpush.bf16.msra.mxu0 %v1101
  %1917 = vmatpush.bf16.msra.mxu0 %v1097
  %1918 = vmatpush.bf16.msra.mxu0 %v1093
  %1919 = vmatmul.bf16.gmra.mxu0 %v328
  %v1920 = vpop.f32.mrf.mxu0
  %v1921 = vadd.f32 %v1902, %v1920
  %v1922 = vpop.f32.mrf.mxu0
  %v1923 = vadd.f32 %v1904, %v1922
  %1924 = vmatmul.bf16.gmra.mxu0 %v335
  %v1925 = vpop.f32.mrf.mxu0
  %v1926 = vadd.f32 %v1907, %v1925
  %v1927 = vpop.f32.mrf.mxu0
  %v1928 = vadd.f32 %v1909, %v1927
  %1929 = vdwg.mxu0
  %1930 = vmatpush.bf16.msra.mxu0 %v1153
  %1931 = vmatpush.bf16.msra.mxu0 %v1149
  %1932 = vmatpush.bf16.msra.mxu0 %v1145
  %1933 = vmatpush.bf16.msra.mxu0 %v1141
  %1934 = vmatpush.bf16.msra.mxu0 %v1137
  %1935 = vmatpush.bf16.msra.mxu0 %v1133
  %1936 = vmatpush.bf16.msra.mxu0 %v1129
  %1937 = vmatpush.bf16.msra.mxu0 %v1125
  %1938 = vmatmul.bf16.gmra.mxu0 %v329
  %v1939 = vpop.f32.mrf.mxu0
  %v1940 = vadd.f32 %v1921, %v1939
  %v1941 = vpop.f32.mrf.mxu0
  %v1942 = vadd.f32 %v1923, %v1941
  %1943 = vmatmul.bf16.gmra.mxu0 %v336
  %v1944 = vpop.f32.mrf.mxu0
  %v1945 = vadd.f32 %v1926, %v1944
  %v1946 = vpop.f32.mrf.mxu0
  %v1947 = vadd.f32 %v1928, %v1946
  %1948 = vdwg.mxu0
  %1949 = vmatpush.bf16.msra.mxu0 %v1185
  %1950 = vmatpush.bf16.msra.mxu0 %v1181
  %1951 = vmatpush.bf16.msra.mxu0 %v1177
  %1952 = vmatpush.bf16.msra.mxu0 %v1173
  %1953 = vmatpush.bf16.msra.mxu0 %v1169
  %1954 = vmatpush.bf16.msra.mxu0 %v1165
  %1955 = vmatpush.bf16.msra.mxu0 %v1161
  %1956 = vmatpush.bf16.msra.mxu0 %v1157
  %1957 = vmatmul.bf16.gmra.mxu0 %v330
  %v1958 = vpop.f32.mrf.mxu0
  %v1959 = vadd.f32 %v1940, %v1958
  %v1960 = vpop.f32.mrf.mxu0
  %v1961 = vadd.f32 %v1942, %v1960
  %1962 = vmatmul.bf16.gmra.mxu0 %v337
  %v1963 = vpop.f32.mrf.mxu0
  %v1964 = vadd.f32 %v1945, %v1963
  %v1965 = vpop.f32.mrf.mxu0
  %v1966 = vadd.f32 %v1947, %v1965
  %1967 = vdwg.mxu0
  %1968 = vmatpush.bf16.msra.mxu0 %v1217
  %1969 = vmatpush.bf16.msra.mxu0 %v1213
  %1970 = vmatpush.bf16.msra.mxu0 %v1209
  %1971 = vmatpush.bf16.msra.mxu0 %v1205
  %1972 = vmatpush.bf16.msra.mxu0 %v1201
  %1973 = vmatpush.bf16.msra.mxu0 %v1197
  %1974 = vmatpush.bf16.msra.mxu0 %v1193
  %1975 = vmatpush.bf16.msra.mxu0 %v1189
  %1976 = vmatmul.bf16.gmra.mxu0 %v331
  %v1977 = vpop.f32.mrf.mxu0
  %v1978 = vadd.f32 %v1959, %v1977
  %v1979 = vpop.f32.mrf.mxu0
  %v1980 = vadd.f32 %v1961, %v1979
  %1981 = vmatmul.bf16.gmra.mxu0 %v338
  %v1982 = vpop.f32.mrf.mxu0
  %v1983 = vadd.f32 %v1964, %v1982
  %v1984 = vpop.f32.mrf.mxu0
  %v1985 = vadd.f32 %v1966, %v1984
  %1986 = vdwg.mxu0
  %1987 = vmatpush.bf16.msra.mxu0 %v1249
  %1988 = vmatpush.bf16.msra.mxu0 %v1245
  %1989 = vmatpush.bf16.msra.mxu0 %v1241
  %1990 = vmatpush.bf16.msra.mxu0 %v1237
  %1991 = vmatpush.bf16.msra.mxu0 %v1233
  %1992 = vmatpush.bf16.msra.mxu0 %v1229
  %1993 = vmatpush.bf16.msra.mxu0 %v1225
  %1994 = vmatpush.bf16.msra.mxu0 %v1221
  %1995 = vmatmul.bf16.gmra.mxu0 %v332
  %v1996 = vpop.f32.mrf.mxu0
  %v1997 = vadd.f32 %v1978, %v1996
  %v1998 = vpop.f32.mrf.mxu0
  %v1999 = vadd.f32 %v1980, %v1998
  %2000 = vmatmul.bf16.gmra.mxu0 %v339
  %v2001 = vpop.f32.mrf.mxu0
  %v2002 = vadd.f32 %v1983, %v2001
  %v2003 = vpop.f32.mrf.mxu0
  %v2004 = vadd.f32 %v1985, %v2003
  %2005 = vdwg.mxu0
  %v2006 = vmax.f32 %v1598, 0.0
  %v2007 = vmax.f32 %v1731, 0.0
  %v2008 = vmax.f32 %v1864, 0.0
  %v2009 = vmax.f32 %v1997, 0.0
  %v2010 = vmax.f32 %v1600, 0.0
  %v2011 = vmax.f32 %v1733, 0.0
  %v2012 = vmax.f32 %v1866, 0.0
  %v2013 = vmax.f32 %v1999, 0.0
  %v2014 = vmax.f32 %v1603, 0.0
  %v2015 = vmax.f32 %v1736, 0.0
  %v2016 = vmax.f32 %v1869, 0.0
  %v2017 = vmax.f32 %v2002, 0.0
  %v2018 = vmax.f32 %v1605, 0.0
  %v2019 = vmax.f32 %v1738, 0.0
  %v2020 = vmax.f32 %v1871, 0.0
  %v2021 = vmax.f32 %v2004, 0.0
  %v2022 = vpack.c.bf16 %v2010, %v2006
  %v2023 = vpack.c.bf16 %v2011, %v2007
  %v2024 = vpack.c.bf16 %v2012, %v2008
  %v2025 = vpack.c.bf16 %v2013, %v2009
  %v2026 = vpack.c.bf16 %v2018, %v2014
  %v2027 = vpack.c.bf16 %v2019, %v2015
  %v2028 = vpack.c.bf16 %v2020, %v2016
  %v2029 = vpack.c.bf16 %v2021, %v2017
  %v2030 = vld [vmem:[%s3] sm:$0xff]
  %v2031 = vld [vmem:[%s3 + $0x8] sm:$0xff]
  %v2032 = vld [vmem:[%s3 + $0x10] sm:$0xff]
  %v2033 = vld [vmem:[%s3 + $0x18] sm:$0xff]
  %v2034 = vld [vmem:[%s3 + $0x20] sm:$0xff]
  %v2035 = vld [vmem:[%s3 + $0x28] sm:$0xff]
  %v2036 = vld [vmem:[%s3 + $0x30] sm:$0xff]
  %v2037 = vld [vmem:[%s3 + $0x38] sm:$0xff]
  %v2038 = vld [vmem:[%s3 + $0x40] sm:$0xff]
  %v2039 = vld [vmem:[%s3 + $0x48] sm:$0xff]
  %v2040 = vld [vmem:[%s3 + $0x50] sm:$0xff]
  %v2041 = vld [vmem:[%s3 + $0x58] sm:$0xff]
  %v2042 = vld [vmem:[%s3 + $0x60] sm:$0xff]
  %v2043 = vld [vmem:[%s3 + $0x68] sm:$0xff]
  %v2044 = vld [vmem:[%s3 + $0x70] sm:$0xff]
  %v2045 = vld [vmem:[%s3 + $0x78] sm:$0xff]
  %v2046 = vld [vmem:[%s3 + $0x80] sm:$0xff]
  %v2047 = vld [vmem:[%s3 + $0x88] sm:$0xff]
  %v2048 = vld [vmem:[%s3 + $0x90] sm:$0xff]
  %v2049 = vld [vmem:[%s3 + $0x98] sm:$0xff]
  %v2050 = vld [vmem:[%s3 + $0xa0] sm:$0xff]
  %v2051 = vld [vmem:[%s3 + $0xa8] sm:$0xff]
  %v2052 = vld [vmem:[%s3 + $0xb0] sm:$0xff]
  %v2053 = vld [vmem:[%s3 + $0xb8] sm:$0xff]
  %v2054 = vld [vmem:[%s3 + $0xc0] sm:$0xff]
  %v2055 = vld [vmem:[%s3 + $0xc8] sm:$0xff]
  %v2056 = vld [vmem:[%s3 + $0xd0] sm:$0xff]
  %v2057 = vld [vmem:[%s3 + $0xd8] sm:$0xff]
  %v2058 = vld [vmem:[%s3 + $0xe0] sm:$0xff]
  %v2059 = vld [vmem:[%s3 + $0xe8] sm:$0xff]
  %v2060 = vld [vmem:[%s3 + $0xf0] sm:$0xff]
  %v2061 = vld [vmem:[%s3 + $0xf8] sm:$0xff]
  %v2062 = vld [vmem:[%s3 + $0x100] sm:$0xff]
  %v2063 = vld [vmem:[%s3 + $0x108] sm:$0xff]
  %v2064 = vld [vmem:[%s3 + $0x110] sm:$0xff]
  %v2065 = vld [vmem:[%s3 + $0x118] sm:$0xff]
  %v2066 = vld [vmem:[%s3 + $0x120] sm:$0xff]
  %v2067 = vld [vmem:[%s3 + $0x128] sm:$0xff]
  %v2068 = vld [vmem:[%s3 + $0x130] sm:$0xff]
  %v2069 = vld [vmem:[%s3 + $0x138] sm:$0xff]
  %v2070 = vld [vmem:[%s3 + $0x140] sm:$0xff]
  %v2071 = vld [vmem:[%s3 + $0x148] sm:$0xff]
  %v2072 = vld [vmem:[%s3 + $0x150] sm:$0xff]
  %v2073 = vld [vmem:[%s3 + $0x158] sm:$0xff]
  %v2074 = vld [vmem:[%s3 + $0x160] sm:$0xff]
  %v2075 = vld [vmem:[%s3 + $0x168] sm:$0xff]
  %v2076 = vld [vmem:[%s3 + $0x170] sm:$0xff]
  %v2077 = vld [vmem:[%s3 + $0x178] sm:$0xff]
  %v2078 = vld [vmem:[%s3 + $0x180] sm:$0xff]
  %v2079 = vld [vmem:[%s3 + $0x188] sm:$0xff]
  %v2080 = vld [vmem:[%s3 + $0x190] sm:$0xff]
  %v2081 = vld [vmem:[%s3 + $0x198] sm:$0xff]
  %v2082 = vld [vmem:[%s3 + $0x1a0] sm:$0xff]
  %v2083 = vld [vmem:[%s3 + $0x1a8] sm:$0xff]
  %v2084 = vld [vmem:[%s3 + $0x1b0] sm:$0xff]
  %v2085 = vld [vmem:[%s3 + $0x1b8] sm:$0xff]
  %v2086 = vld [vmem:[%s3 + $0x1c0] sm:$0xff]
  %v2087 = vld [vmem:[%s3 + $0x1c8] sm:$0xff]
  %v2088 = vld [vmem:[%s3 + $0x1d0] sm:$0xff]
  %v2089 = vld [vmem:[%s3 + $0x1d8] sm:$0xff]
  %v2090 = vld [vmem:[%s3 + $0x1e0] sm:$0xff]
  %v2091 = vld [vmem:[%s3 + $0x1e8] sm:$0xff]
  %v2092 = vld [vmem:[%s3 + $0x1f0] sm:$0xff]
  %v2093 = vld [vmem:[%s3 + $0x1f8] sm:$0xff]
  %v2094 = vld [vmem:[%s4] sm:$0x3]
  %v2096 = vperm.slane %v2094, 0
  %v2097 = vperm.slane %v2094, 1
  %v2164 = vunpack.c.l.b16 %v2030
  %v2165 = vunpack.c.h.b16 %v2030
  %v2166 = vunpack.c.l.b16 %v2031
  %v2167 = vunpack.c.h.b16 %v2031
  %v2168 = vunpack.c.l.b16 %v2032
  %v2169 = vunpack.c.h.b16 %v2032
  %v2170 = vunpack.c.l.b16 %v2033
  %v2171 = vunpack.c.h.b16 %v2033
  %v2172 = vunpack.c.l.b16 %v2034
  %v2173 = vunpack.c.h.b16 %v2034
  %v2174 = vunpack.c.l.b16 %v2035
  %v2175 = vunpack.c.h.b16 %v2035
  %v2176 = vunpack.c.l.b16 %v2036
  %v2177 = vunpack.c.h.b16 %v2036
  %v2178 = vunpack.c.l.b16 %v2037
  %v2179 = vunpack.c.h.b16 %v2037
  %v2180 = vunpack.c.l.b16 %v2038
  %v2181 = vunpack.c.h.b16 %v2038
  %v2182 = vunpack.c.l.b16 %v2039
  %v2183 = vunpack.c.h.b16 %v2039
  %v2184 = vunpack.c.l.b16 %v2040
  %v2185 = vunpack.c.h.b16 %v2040
  %v2186 = vunpack.c.l.b16 %v2041
  %v2187 = vunpack.c.h.b16 %v2041
  %v2188 = vunpack.c.l.b16 %v2042
  %v2189 = vunpack.c.h.b16 %v2042
  %v2190 = vunpack.c.l.b16 %v2043
  %v2191 = vunpack.c.h.b16 %v2043
  %v2192 = vunpack.c.l.b16 %v2044
  %v2193 = vunpack.c.h.b16 %v2044
  %v2194 = vunpack.c.l.b16 %v2045
  %v2195 = vunpack.c.h.b16 %v2045
  %v2196 = vunpack.c.l.b16 %v2046
  %v2197 = vunpack.c.h.b16 %v2046
  %v2198 = vunpack.c.l.b16 %v2047
  %v2199 = vunpack.c.h.b16 %v2047
  %v2200 = vunpack.c.l.b16 %v2048
  %v2201 = vunpack.c.h.b16 %v2048
  %v2202 = vunpack.c.l.b16 %v2049
  %v2203 = vunpack.c.h.b16 %v2049
  %v2204 = vunpack.c.l.b16 %v2050
  %v2205 = vunpack.c.h.b16 %v2050
  %v2206 = vunpack.c.l.b16 %v2051
  %v2207 = vunpack.c.h.b16 %v2051
  %v2208 = vunpack.c.l.b16 %v2052
  %v2209 = vunpack.c.h.b16 %v2052
  %v2210 = vunpack.c.l.b16 %v2053
  %v2211 = vunpack.c.h.b16 %v2053
  %v2212 = vunpack.c.l.b16 %v2054
  %v2213 = vunpack.c.h.b16 %v2054
  %v2214 = vunpack.c.l.b16 %v2055
  %v2215 = vunpack.c.h.b16 %v2055
  %v2216 = vunpack.c.l.b16 %v2056
  %v2217 = vunpack.c.h.b16 %v2056
  %v2218 = vunpack.c.l.b16 %v2057
  %v2219 = vunpack.c.h.b16 %v2057
  %v2220 = vunpack.c.l.b16 %v2058
  %v2221 = vunpack.c.h.b16 %v2058
  %v2222 = vunpack.c.l.b16 %v2059
  %v2223 = vunpack.c.h.b16 %v2059
  %v2224 = vunpack.c.l.b16 %v2060
  %v2225 = vunpack.c.h.b16 %v2060
  %v2226 = vunpack.c.l.b16 %v2061
  %v2227 = vunpack.c.h.b16 %v2061
  %v2228 = vunpack.c.l.b16 %v2062
  %v2229 = vunpack.c.h.b16 %v2062
  %v2230 = vunpack.c.l.b16 %v2063
  %v2231 = vunpack.c.h.b16 %v2063
  %v2232 = vunpack.c.l.b16 %v2064
  %v2233 = vunpack.c.h.b16 %v2064
  %v2234 = vunpack.c.l.b16 %v2065
  %v2235 = vunpack.c.h.b16 %v2065
  %v2236 = vunpack.c.l.b16 %v2066
  %v2237 = vunpack.c.h.b16 %v2066
  %v2238 = vunpack.c.l.b16 %v2067
  %v2239 = vunpack.c.h.b16 %v2067
  %v2240 = vunpack.c.l.b16 %v2068
  %v2241 = vunpack.c.h.b16 %v2068
  %v2242 = vunpack.c.l.b16 %v2069
  %v2243 = vunpack.c.h.b16 %v2069
  %v2244 = vunpack.c.l.b16 %v2070
  %v2245 = vunpack.c.h.b16 %v2070
  %v2246 = vunpack.c.l.b16 %v2071
  %v2247 = vunpack.c.h.b16 %v2071
  %v2248 = vunpack.c.l.b16 %v2072
  %v2249 = vunpack.c.h.b16 %v2072
  %v2250 = vunpack.c.l.b16 %v2073
  %v2251 = vunpack.c.h.b16 %v2073
  %v2252 = vunpack.c.l.b16 %v2074
  %v2253 = vunpack.c.h.b16 %v2074
  %v2254 = vunpack.c.l.b16 %v2075
  %v2255 = vunpack.c.h.b16 %v2075
  %v2256 = vunpack.c.l.b16 %v2076
  %v2257 = vunpack.c.h.b16 %v2076
  %v2258 = vunpack.c.l.b16 %v2077
  %v2259 = vunpack.c.h.b16 %v2077
  %v2260 = vunpack.c.l.b16 %v2078
  %v2261 = vunpack.c.h.b16 %v2078
  %v2262 = vunpack.c.l.b16 %v2079
  %v2263 = vunpack.c.h.b16 %v2079
  %v2264 = vunpack.c.l.b16 %v2080
  %v2265 = vunpack.c.h.b16 %v2080
  %v2266 = vunpack.c.l.b16 %v2081
  %v2267 = vunpack.c.h.b16 %v2081
  %v2268 = vunpack.c.l.b16 %v2082
  %v2269 = vunpack.c.h.b16 %v2082
  %v2270 = vunpack.c.l.b16 %v2083
  %v2271 = vunpack.c.h.b16 %v2083
  %v2272 = vunpack.c.l.b16 %v2084
  %v2273 = vunpack.c.h.b16 %v2084
  %v2274 = vunpack.c.l.b16 %v2085
  %v2275 = vunpack.c.h.b16 %v2085
  %v2276 = vunpack.c.l.b16 %v2086
  %v2277 = vunpack.c.h.b16 %v2086
  %v2278 = vunpack.c.l.b16 %v2087
  %v2279 = vunpack.c.h.b16 %v2087
  %v2280 = vunpack.c.l.b16 %v2088
  %v2281 = vunpack.c.h.b16 %v2088
  %v2282 = vunpack.c.l.b16 %v2089
  %v2283 = vunpack.c.h.b16 %v2089
  %v2284 = vunpack.c.l.b16 %v2090
  %v2285 = vunpack.c.h.b16 %v2090
  %v2286 = vunpack.c.l.b16 %v2091
  %v2287 = vunpack.c.h.b16 %v2091
  %v2288 = vunpack.c.l.b16 %v2092
  %v2289 = vunpack.c.h.b16 %v2092
  %v2290 = vunpack.c.l.b16 %v2093
  %v2291 = vunpack.c.h.b16 %v2093
  %v2292 = vpack.c.b16 %v2166, %v2164
  %v2293 = vpack.c.b16 %v2167, %v2165
  %v2294 = vpack.c.b16 %v2170, %v2168
  %v2295 = vpack.c.b16 %v2171, %v2169
  %v2296 = vpack.c.b16 %v2174, %v2172
  %v2297 = vpack.c.b16 %v2175, %v2173
  %v2298 = vpack.c.b16 %v2178, %v2176
  %v2299 = vpack.c.b16 %v2179, %v2177
  %v2300 = vpack.c.b16 %v2182, %v2180
  %v2301 = vpack.c.b16 %v2183, %v2181
  %v2302 = vpack.c.b16 %v2186, %v2184
  %v2303 = vpack.c.b16 %v2187, %v2185
  %v2304 = vpack.c.b16 %v2190, %v2188
  %v2305 = vpack.c.b16 %v2191, %v2189
  %v2306 = vpack.c.b16 %v2194, %v2192
  %v2307 = vpack.c.b16 %v2195, %v2193
  %v2308 = vpack.c.b16 %v2198, %v2196
  %v2309 = vpack.c.b16 %v2199, %v2197
  %v2310 = vpack.c.b16 %v2202, %v2200
  %v2311 = vpack.c.b16 %v2203, %v2201
  %v2312 = vpack.c.b16 %v2206, %v2204
  %v2313 = vpack.c.b16 %v2207, %v2205
  %v2314 = vpack.c.b16 %v2210, %v2208
  %v2315 = vpack.c.b16 %v2211, %v2209
  %v2316 = vpack.c.b16 %v2214, %v2212
  %v2317 = vpack.c.b16 %v2215, %v2213
  %v2318 = vpack.c.b16 %v2218, %v2216
  %v2319 = vpack.c.b16 %v2219, %v2217
  %v2320 = vpack.c.b16 %v2222, %v2220
  %v2321 = vpack.c.b16 %v2223, %v2221
  %v2322 = vpack.c.b16 %v2226, %v2224
  %v2323 = vpack.c.b16 %v2227, %v2225
  %v2324 = vpack.c.b16 %v2230, %v2228
  %v2325 = vpack.c.b16 %v2231, %v2229
  %v2326 = vpack.c.b16 %v2234, %v2232
  %v2327 = vpack.c.b16 %v2235, %v2233
  %v2328 = vpack.c.b16 %v2238, %v2236
  %v2329 = vpack.c.b16 %v2239, %v2237
  %v2330 = vpack.c.b16 %v2242, %v2240
  %v2331 = vpack.c.b16 %v2243, %v2241
  %v2332 = vpack.c.b16 %v2246, %v2244
  %v2333 = vpack.c.b16 %v2247, %v2245
  %v2334 = vpack.c.b16 %v2250, %v2248
  %v2335 = vpack.c.b16 %v2251, %v2249
  %v2336 = vpack.c.b16 %v2254, %v2252
  %v2337 = vpack.c.b16 %v2255, %v2253
  %v2338 = vpack.c.b16 %v2258, %v2256
  %v2339 = vpack.c.b16 %v2259, %v2257
  %v2340 = vpack.c.b16 %v2262, %v2260
  %v2341 = vpack.c.b16 %v2263, %v2261
  %v2342 = vpack.c.b16 %v2266, %v2264
  %v2343 = vpack.c.b16 %v2267, %v2265
  %v2344 = vpack.c.b16 %v2270, %v2268
  %v2345 = vpack.c.b16 %v2271, %v2269
  %v2346 = vpack.c.b16 %v2274, %v2272
  %v2347 = vpack.c.b16 %v2275, %v2273
  %v2348 = vpack.c.b16 %v2278, %v2276
  %v2349 = vpack.c.b16 %v2279, %v2277
  %v2350 = vpack.c.b16 %v2282, %v2280
  %v2351 = vpack.c.b16 %v2283, %v2281
  %v2352 = vpack.c.b16 %v2286, %v2284
  %v2353 = vpack.c.b16 %v2287, %v2285
  %v2354 = vpack.c.b16 %v2290, %v2288
  %v2355 = vpack.c.b16 %v2291, %v2289
  %2420 = vmatpush.bf16.msra.mxu0 %v2306
  %2421 = vmatpush.bf16.msra.mxu0 %v2304
  %2422 = vmatpush.bf16.msra.mxu0 %v2302
  %2423 = vmatpush.bf16.msra.mxu0 %v2300
  %2424 = vmatpush.bf16.msra.mxu0 %v2298
  %2425 = vmatpush.bf16.msra.mxu0 %v2296
  %2426 = vmatpush.bf16.msra.mxu0 %v2294
  %2427 = vmatpush.bf16.msra.mxu0 %v2292
  %2428 = vmatmul.bf16.gmra.mxu0 %v2022
  %v2429 = vpop.f32.mrf.mxu0
  %v2430 = vadd.f32 %v2096, %v2429
  %v2431 = vpop.f32.mrf.mxu0
  %v2432 = vadd.f32 %v2096, %v2431
  %2433 = vmatmul.bf16.gmra.mxu0 %v2026
  %v2434 = vpop.f32.mrf.mxu0
  %v2435 = vadd.f32 %v2096, %v2434
  %v2436 = vpop.f32.mrf.mxu0
  %v2437 = vadd.f32 %v2096, %v2436
  %2438 = vdwg.mxu0
  %2439 = vmatpush.bf16.msra.mxu0 %v2322
  %2440 = vmatpush.bf16.msra.mxu0 %v2320
  %2441 = vmatpush.bf16.msra.mxu0 %v2318
  %2442 = vmatpush.bf16.msra.mxu0 %v2316
  %2443 = vmatpush.bf16.msra.mxu0 %v2314
  %2444 = vmatpush.bf16.msra.mxu0 %v2312
  %2445 = vmatpush.bf16.msra.mxu0 %v2310
  %2446 = vmatpush.bf16.msra.mxu0 %v2308
  %2447 = vmatmul.bf16.gmra.mxu0 %v2023
  %v2448 = vpop.f32.mrf.mxu0
  %v2449 = vadd.f32 %v2430, %v2448
  %v2450 = vpop.f32.mrf.mxu0
  %v2451 = vadd.f32 %v2432, %v2450
  %2452 = vmatmul.bf16.gmra.mxu0 %v2027
  %v2453 = vpop.f32.mrf.mxu0
  %v2454 = vadd.f32 %v2435, %v2453
  %v2455 = vpop.f32.mrf.mxu0
  %v2456 = vadd.f32 %v2437, %v2455
  %2457 = vdwg.mxu0
  %2458 = vmatpush.bf16.msra.mxu0 %v2338
  %2459 = vmatpush.bf16.msra.mxu0 %v2336
  %2460 = vmatpush.bf16.msra.mxu0 %v2334
  %2461 = vmatpush.bf16.msra.mxu0 %v2332
  %2462 = vmatpush.bf16.msra.mxu0 %v2330
  %2463 = vmatpush.bf16.msra.mxu0 %v2328
  %2464 = vmatpush.bf16.msra.mxu0 %v2326
  %2465 = vmatpush.bf16.msra.mxu0 %v2324
  %2466 = vmatmul.bf16.gmra.mxu0 %v2024
  %v2467 = vpop.f32.mrf.mxu0
  %v2468 = vadd.f32 %v2449, %v2467
  %v2469 = vpop.f32.mrf.mxu0
  %v2470 = vadd.f32 %v2451, %v2469
  %2471 = vmatmul.bf16.gmra.mxu0 %v2028
  %v2472 = vpop.f32.mrf.mxu0
  %v2473 = vadd.f32 %v2454, %v2472
  %v2474 = vpop.f32.mrf.mxu0
  %v2475 = vadd.f32 %v2456, %v2474
  %2476 = vdwg.mxu0
  %2477 = vmatpush.bf16.msra.mxu0 %v2354
  %2478 = vmatpush.bf16.msra.mxu0 %v2352
  %2479 = vmatpush.bf16.msra.mxu0 %v2350
  %2480 = vmatpush.bf16.msra.mxu0 %v2348
  %2481 = vmatpush.bf16.msra.mxu0 %v2346
  %2482 = vmatpush.bf16.msra.mxu0 %v2344
  %2483 = vmatpush.bf16.msra.mxu0 %v2342
  %2484 = vmatpush.bf16.msra.mxu0 %v2340
  %2485 = vmatmul.bf16.gmra.mxu0 %v2025
  %v2486 = vpop.f32.mrf.mxu0
  %v2487 = vadd.f32 %v2468, %v2486
  %v2488 = vpop.f32.mrf.mxu0
  %v2489 = vadd.f32 %v2470, %v2488
  %2490 = vmatmul.bf16.gmra.mxu0 %v2029
  %v2491 = vpop.f32.mrf.mxu0
  %v2492 = vadd.f32 %v2473, %v2491
  %v2493 = vpop.f32.mrf.mxu0
  %v2494 = vadd.f32 %v2475, %v2493
  %2495 = vdwg.mxu0
  %2496 = vmatpush.bf16.msra.mxu0 %v2307
  %2497 = vmatpush.bf16.msra.mxu0 %v2305
  %2498 = vmatpush.bf16.msra.mxu0 %v2303
  %2499 = vmatpush.bf16.msra.mxu0 %v2301
  %2500 = vmatpush.bf16.msra.mxu0 %v2299
  %2501 = vmatpush.bf16.msra.mxu0 %v2297
  %2502 = vmatpush.bf16.msra.mxu0 %v2295
  %2503 = vmatpush.bf16.msra.mxu0 %v2293
  %2504 = vmatmul.bf16.gmra.mxu0 %v2022
  %v2505 = vpop.f32.mrf.mxu0
  %v2506 = vadd.f32 %v2097, %v2505
  %v2507 = vpop.f32.mrf.mxu0
  %v2508 = vadd.f32 %v2097, %v2507
  %2509 = vmatmul.bf16.gmra.mxu0 %v2026
  %v2510 = vpop.f32.mrf.mxu0
  %v2511 = vadd.f32 %v2097, %v2510
  %v2512 = vpop.f32.mrf.mxu0
  %v2513 = vadd.f32 %v2097, %v2512
  %2514 = vdwg.mxu0
  %2515 = vmatpush.bf16.msra.mxu0 %v2323
  %2516 = vmatpush.bf16.msra.mxu0 %v2321
  %2517 = vmatpush.bf16.msra.mxu0 %v2319
  %2518 = vmatpush.bf16.msra.mxu0 %v2317
  %2519 = vmatpush.bf16.msra.mxu0 %v2315
  %2520 = vmatpush.bf16.msra.mxu0 %v2313
  %2521 = vmatpush.bf16.msra.mxu0 %v2311
  %2522 = vmatpush.bf16.msra.mxu0 %v2309
  %2523 = vmatmul.bf16.gmra.mxu0 %v2023
  %v2524 = vpop.f32.mrf.mxu0
  %v2525 = vadd.f32 %v2506, %v2524
  %v2526 = vpop.f32.mrf.mxu0
  %v2527 = vadd.f32 %v2508, %v2526
  %2528 = vmatmul.bf16.gmra.mxu0 %v2027
  %v2529 = vpop.f32.mrf.mxu0
  %v2530 = vadd.f32 %v2511, %v2529
  %v2531 = vpop.f32.mrf.mxu0
  %v2532 = vadd.f32 %v2513, %v2531
  %2533 = vdwg.mxu0
  %2534 = vmatpush.bf16.msra.mxu0 %v2339
  %2535 = vmatpush.bf16.msra.mxu0 %v2337
  %2536 = vmatpush.bf16.msra.mxu0 %v2335
  %2537 = vmatpush.bf16.msra.mxu0 %v2333
  %2538 = vmatpush.bf16.msra.mxu0 %v2331
  %2539 = vmatpush.bf16.msra.mxu0 %v2329
  %2540 = vmatpush.bf16.msra.mxu0 %v2327
  %2541 = vmatpush.bf16.msra.mxu0 %v2325
  %2542 = vmatmul.bf16.gmra.mxu0 %v2024
  %v2543 = vpop.f32.mrf.mxu0
  %v2544 = vadd.f32 %v2525, %v2543
  %v2545 = vpop.f32.mrf.mxu0
  %v2546 = vadd.f32 %v2527, %v2545
  %2547 = vmatmul.bf16.gmra.mxu0 %v2028
  %v2548 = vpop.f32.mrf.mxu0
  %v2549 = vadd.f32 %v2530, %v2548
  %v2550 = vpop.f32.mrf.mxu0
  %v2551 = vadd.f32 %v2532, %v2550
  %2552 = vdwg.mxu0
  %2553 = vmatpush.bf16.msra.mxu0 %v2355
  %2554 = vmatpush.bf16.msra.mxu0 %v2353
  %2555 = vmatpush.bf16.msra.mxu0 %v2351
  %2556 = vmatpush.bf16.msra.mxu0 %v2349
  %2557 = vmatpush.bf16.msra.mxu0 %v2347
  %2558 = vmatpush.bf16.msra.mxu0 %v2345
  %2559 = vmatpush.bf16.msra.mxu0 %v2343
  %2560 = vmatpush.bf16.msra.mxu0 %v2341
  %2561 = vmatmul.bf16.gmra.mxu0 %v2025
  %v2562 = vpop.f32.mrf.mxu0
  %v2563 = vadd.f32 %v2544, %v2562
  %v2564 = vpop.f32.mrf.mxu0
  %v2565 = vadd.f32 %v2546, %v2564
  %2566 = vmatmul.bf16.gmra.mxu0 %v2029
  %v2567 = vpop.f32.mrf.mxu0
  %v2568 = vadd.f32 %v2549, %v2567
  %v2569 = vpop.f32.mrf.mxu0
  %v2570 = vadd.f32 %v2551, %v2569
  %2571 = vdwg.mxu0
  %v2572 = vmax.f32 %v2487, 0.0
  %v2573 = vmax.f32 %v2563, 0.0
  %v2574 = vmax.f32 %v2489, 0.0
  %v2575 = vmax.f32 %v2565, 0.0
  %v2576 = vmax.f32 %v2492, 0.0
  %v2577 = vmax.f32 %v2568, 0.0
  %v2578 = vmax.f32 %v2494, 0.0
  %v2579 = vmax.f32 %v2570, 0.0
  %v2580 = vpack.c.bf16 %v2574, %v2572
  %v2581 = vpack.c.bf16 %v2575, %v2573
  %v2582 = vpack.c.bf16 %v2578, %v2576
  %v2583 = vpack.c.bf16 %v2579, %v2577
  %v2584 = vld [vmem:[%s5] sm:$0xf]
  %v2585 = vld [vmem:[%s5 + $0x4] sm:$0xf]
  %v2586 = vld [vmem:[%s5 + $0x8] sm:$0xf]
  %v2587 = vld [vmem:[%s5 + $0xc] sm:$0xf]
  %v2588 = vld [vmem:[%s5 + $0x10] sm:$0xf]
  %v2589 = vld [vmem:[%s5 + $0x14] sm:$0xf]
  %v2590 = vld [vmem:[%s5 + $0x18] sm:$0xf]
  %v2591 = vld [vmem:[%s5 + $0x1c] sm:$0xf]
  %v2592 = vld [vmem:[%s5 + $0x20] sm:$0xf]
  %v2593 = vld [vmem:[%s5 + $0x24] sm:$0xf]
  %v2594 = vld [vmem:[%s5 + $0x28] sm:$0xf]
  %v2595 = vld [vmem:[%s5 + $0x2c] sm:$0xf]
  %v2596 = vld [vmem:[%s5 + $0x30] sm:$0xf]
  %v2597 = vld [vmem:[%s5 + $0x34] sm:$0xf]
  %v2598 = vld [vmem:[%s5 + $0x38] sm:$0xf]
  %v2599 = vld [vmem:[%s5 + $0x3c] sm:$0xf]
  %v2600 = vld [vmem:[%s5 + $0x40] sm:$0xf]
  %v2601 = vld [vmem:[%s5 + $0x44] sm:$0xf]
  %v2602 = vld [vmem:[%s5 + $0x48] sm:$0xf]
  %v2603 = vld [vmem:[%s5 + $0x4c] sm:$0xf]
  %v2604 = vld [vmem:[%s5 + $0x50] sm:$0xf]
  %v2605 = vld [vmem:[%s5 + $0x54] sm:$0xf]
  %v2606 = vld [vmem:[%s5 + $0x58] sm:$0xf]
  %v2607 = vld [vmem:[%s5 + $0x5c] sm:$0xf]
  %v2608 = vld [vmem:[%s5 + $0x60] sm:$0xf]
  %v2609 = vld [vmem:[%s5 + $0x64] sm:$0xf]
  %v2610 = vld [vmem:[%s5 + $0x68] sm:$0xf]
  %v2611 = vld [vmem:[%s5 + $0x6c] sm:$0xf]
  %v2612 = vld [vmem:[%s5 + $0x70] sm:$0xf]
  %v2613 = vld [vmem:[%s5 + $0x74] sm:$0xf]
  %v2614 = vld [vmem:[%s5 + $0x78] sm:$0xf]
  %v2615 = vld [vmem:[%s5 + $0x7c] sm:$0xf]
  %v2616 = vld [vmem:[%s6] sm:$0x1]
  %v2618 = vperm.slane %v2616, 0
  %v2652 = vunpack.c.l.b16 %v2584
  %v2653 = vunpack.c.l.b16 %v2585
  %v2654 = vunpack.c.l.b16 %v2586
  %v2655 = vunpack.c.l.b16 %v2587
  %v2656 = vunpack.c.l.b16 %v2588
  %v2657 = vunpack.c.l.b16 %v2589
  %v2658 = vunpack.c.l.b16 %v2590
  %v2659 = vunpack.c.l.b16 %v2591
  %v2660 = vunpack.c.l.b16 %v2592
  %v2661 = vunpack.c.l.b16 %v2593
  %v2662 = vunpack.c.l.b16 %v2594
  %v2663 = vunpack.c.l.b16 %v2595
  %v2664 = vunpack.c.l.b16 %v2596
  %v2665 = vunpack.c.l.b16 %v2597
  %v2666 = vunpack.c.l.b16 %v2598
  %v2667 = vunpack.c.l.b16 %v2599
  %v2668 = vunpack.c.l.b16 %v2600
  %v2669 = vunpack.c.l.b16 %v2601
  %v2670 = vunpack.c.l.b16 %v2602
  %v2671 = vunpack.c.l.b16 %v2603
  %v2672 = vunpack.c.l.b16 %v2604
  %v2673 = vunpack.c.l.b16 %v2605
  %v2674 = vunpack.c.l.b16 %v2606
  %v2675 = vunpack.c.l.b16 %v2607
  %v2676 = vunpack.c.l.b16 %v2608
  %v2677 = vunpack.c.l.b16 %v2609
  %v2678 = vunpack.c.l.b16 %v2610
  %v2679 = vunpack.c.l.b16 %v2611
  %v2680 = vunpack.c.l.b16 %v2612
  %v2681 = vunpack.c.l.b16 %v2613
  %v2682 = vunpack.c.l.b16 %v2614
  %v2683 = vunpack.c.l.b16 %v2615
  %v2684 = vpack.c.b16 %v2653, %v2652
  %v2685 = vpack.c.b16 %v2655, %v2654
  %v2686 = vpack.c.b16 %v2657, %v2656
  %v2687 = vpack.c.b16 %v2659, %v2658
  %v2688 = vpack.c.b16 %v2661, %v2660
  %v2689 = vpack.c.b16 %v2663, %v2662
  %v2690 = vpack.c.b16 %v2665, %v2664
  %v2691 = vpack.c.b16 %v2667, %v2666
  %v2692 = vpack.c.b16 %v2669, %v2668
  %v2693 = vpack.c.b16 %v2671, %v2670
  %v2694 = vpack.c.b16 %v2673, %v2672
  %v2695 = vpack.c.b16 %v2675, %v2674
  %v2696 = vpack.c.b16 %v2677, %v2676
  %v2697 = vpack.c.b16 %v2679, %v2678
  %v2698 = vpack.c.b16 %v2681, %v2680
  %v2699 = vpack.c.b16 %v2683, %v2682
  %2716 = vmatpush.bf16.msra.mxu0 %v2691
  %2717 = vmatpush.bf16.msra.mxu0 %v2690
  %2718 = vmatpush.bf16.msra.mxu0 %v2689
  %2719 = vmatpush.bf16.msra.mxu0 %v2688
  %2720 = vmatpush.bf16.msra.mxu0 %v2687
  %2721 = vmatpush.bf16.msra.mxu0 %v2686
  %2722 = vmatpush.bf16.msra.mxu0 %v2685
  %2723 = vmatpush.bf16.msra.mxu0 %v2684
  %2724 = vmatmul.bf16.gmra.mxu0 %v2580
  %v2725 = vpop.f32.mrf.mxu0
  %v2726 = vadd.f32 %v2618, %v2725
  %v2727 = vpop.f32.mrf.mxu0
  %v2728 = vadd.f32 %v2618, %v2727
  %2729 = vmatmul.bf16.gmra.mxu0 %v2582
  %v2730 = vpop.f32.mrf.mxu0
  %v2731 = vadd.f32 %v2618, %v2730
  %v2732 = vpop.f32.mrf.mxu0
  %v2733 = vadd.f32 %v2618, %v2732
  %2734 = vdwg.mxu0
  %2735 = vmatpush.bf16.msra.mxu0 %v2699
  %2736 = vmatpush.bf16.msra.mxu0 %v2698
  %2737 = vmatpush.bf16.msra.mxu0 %v2697
  %2738 = vmatpush.bf16.msra.mxu0 %v2696
  %2739 = vmatpush.bf16.msra.mxu0 %v2695
  %2740 = vmatpush.bf16.msra.mxu0 %v2694
  %2741 = vmatpush.bf16.msra.mxu0 %v2693
  %2742 = vmatpush.bf16.msra.mxu0 %v2692
  %2743 = vmatmul.bf16.gmra.mxu0 %v2581
  %v2744 = vpop.f32.mrf.mxu0
  %v2745 = vadd.f32 %v2726, %v2744
  %v2746 = vpop.f32.mrf.mxu0
  %v2747 = vadd.f32 %v2728, %v2746
  %2748 = vmatmul.bf16.gmra.mxu0 %v2583
  %v2749 = vpop.f32.mrf.mxu0
  %v2750 = vadd.f32 %v2731, %v2749
  %v2751 = vpop.f32.mrf.mxu0
  %v2752 = vadd.f32 %v2733, %v2751
  %2753 = vdwg.mxu0
  %v2754 = vmax.f32 %v2745, 0.0
  %v2755 = vmax.f32 %v2747, 0.0
  %v2756 = vmax.f32 %v2750, 0.0
  %v2757 = vmax.f32 %v2752, 0.0
  %v2758 = vpack.c.bf16 %v2755, %v2754
  %v2759 = vpack.c.bf16 %v2757, %v2756
  %v2760 = vld [vmem:[%s7] sm:$0xf]
  %v2761 = vld [vmem:[%s7 + $0x4] sm:$0xf]
  %v2762 = vld [vmem:[%s7 + $0x8] sm:$0xf]
  %v2763 = vld [vmem:[%s7 + $0xc] sm:$0xf]
  %v2764 = vld [vmem:[%s7 + $0x10] sm:$0xf]
  %v2765 = vld [vmem:[%s7 + $0x14] sm:$0xf]
  %v2766 = vld [vmem:[%s7 + $0x18] sm:$0xf]
  %v2767 = vld [vmem:[%s7 + $0x1c] sm:$0xf]
  %v2768 = vld [vmem:[%s7 + $0x20] sm:$0xf]
  %v2769 = vld [vmem:[%s7 + $0x24] sm:$0xf]
  %v2770 = vld [vmem:[%s7 + $0x28] sm:$0xf]
  %v2771 = vld [vmem:[%s7 + $0x2c] sm:$0xf]
  %v2772 = vld [vmem:[%s7 + $0x30] sm:$0xf]
  %v2773 = vld [vmem:[%s7 + $0x34] sm:$0xf]
  %v2774 = vld [vmem:[%s7 + $0x38] sm:$0xf]
  %v2775 = vld [vmem:[%s7 + $0x3c] sm:$0xf]
  %v2776 = vld [vmem:[%s8] sm:$0x1]
  %v2778 = vperm.slane %v2776, 0
  %v2796 = vunpack.c.l.b16 %v2760
  %v2797 = vunpack.c.l.b16 %v2761
  %v2798 = vunpack.c.l.b16 %v2762
  %v2799 = vunpack.c.l.b16 %v2763
  %v2800 = vunpack.c.l.b16 %v2764
  %v2801 = vunpack.c.l.b16 %v2765
  %v2802 = vunpack.c.l.b16 %v2766
  %v2803 = vunpack.c.l.b16 %v2767
  %v2804 = vunpack.c.l.b16 %v2768
  %v2805 = vunpack.c.l.b16 %v2769
  %v2806 = vunpack.c.l.b16 %v2770
  %v2807 = vunpack.c.l.b16 %v2771
  %v2808 = vunpack.c.l.b16 %v2772
  %v2809 = vunpack.c.l.b16 %v2773
  %v2810 = vunpack.c.l.b16 %v2774
  %v2811 = vunpack.c.l.b16 %v2775
  %v2812 = vpack.c.b16 %v2797, %v2796
  %v2813 = vpack.c.b16 %v2799, %v2798
  %v2814 = vpack.c.b16 %v2801, %v2800
  %v2815 = vpack.c.b16 %v2803, %v2802
  %v2816 = vpack.c.b16 %v2805, %v2804
  %v2817 = vpack.c.b16 %v2807, %v2806
  %v2818 = vpack.c.b16 %v2809, %v2808
  %v2819 = vpack.c.b16 %v2811, %v2810
  %2828 = vmatpush.bf16.msra.mxu0 %v2819
  %2829 = vmatpush.bf16.msra.mxu0 %v2818
  %2830 = vmatpush.bf16.msra.mxu0 %v2817
  %2831 = vmatpush.bf16.msra.mxu0 %v2816
  %2832 = vmatpush.bf16.msra.mxu0 %v2815
  %2833 = vmatpush.bf16.msra.mxu0 %v2814
  %2834 = vmatpush.bf16.msra.mxu0 %v2813
  %2835 = vmatpush.bf16.msra.mxu0 %v2812
  %2836 = vmatmul.bf16.gmra.mxu0 %v2758
  %v2837 = vpop.f32.mrf.mxu0
  %v2838 = vadd.f32 %v2778, %v2837
  %v2839 = vpop.f32.mrf.mxu0
  %v2840 = vadd.f32 %v2778, %v2839
  %2841 = vmatmul.bf16.gmra.mxu0 %v2759
  %v2842 = vpop.f32.mrf.mxu0
  %v2843 = vadd.f32 %v2778, %v2842
  %v2844 = vpop.f32.mrf.mxu0
  %v2845 = vadd.f32 %v2778, %v2844
  %2846 = vdwg.mxu0
  %2847 = vst [vmem:[%s9] sm:$0xff] %v2838
  %2848 = vst [vmem:[%s9 + $0x8] sm:$0xff] %v2840
  %2849 = vst [vmem:[%s9 + $0x10] sm:$0xff] %v2843
  %2850 = vst [vmem:[%s9 + $0x18] sm:$0xff] %v2845
  // Predicated region
  $region38: #{dnn_forward.1} parent=0 // pred_check
    _
  $region39: #{dnn_forward.1} parent=0 // pred_check_branch
    %2852 = sbr.rel (0) target = $region41
  $region40: #{dnn_forward.1} parent=0 // pred_region
    _
  $region41: #{dnn_forward.1} parent=0 // pred_fallthru
    _
  // Predicated region
  $region42: #{dnn_forward.1} parent=0 // pred_check
    _
  $region43: #{dnn_forward.1} parent=0 // pred_check_branch
    %2854 = sbr.rel (0) target = $region45
  $region44: #{dnn_forward.1} parent=0 // pred_region
    _
  $region45: #{dnn_forward.1} parent=0 // pred_fallthru
    _

</llo_original>
